<compile_context>
chip_gen: v6e
topology: v6e:2x2x1
jax: 0.10.0
libtpu: 0.0.40
codegen_flags: <defaults>
</compile_context>

<pallas_src>
import functools

import jax
import jax.numpy as jnp
from jax.experimental import pallas as pl
from jax.experimental.pallas import tpu as pltpu


def _round_up(x, m):
    return ((x + m - 1) // m) * m


def ood_head_kernel(h_ref, w1_ref, b1_ref, w2_ref, b2_ref, lbl_ref,
                    pooled_ref, feat_ref, logits_ref, nll_ref,
                    acc_ref, *, inv_seq_len, num_classes, seq_len, s_tile,
                    mask_seq_tail):
    si = pl.program_id(1)

    @pl.when(si == 0)
    def _init():
        acc_ref[...] = jnp.zeros_like(acc_ref)

    # Streaming sum over this (b_tile, s_tile, D) slab, f32 accumulation
    # without materializing an f32 copy of the slab.
    h = h_ref[...]
    if mask_seq_tail:
        # h is unpadded in HBM: the last S tile's out-of-bounds rows are stale
        # garbage in VMEM -- zero them before accumulating.
        s_pos = si * s_tile + jax.lax.broadcasted_iota(jnp.int32, h.shape, 1)
        h = jnp.where(s_pos < seq_len, h, jnp.zeros_like(h))
    acc_ref[...] += jnp.sum(h, axis=1, dtype=jnp.float32)

    @pl.when(si == pl.num_programs(1) - 1)
    def _finalize():
        # encoder_last_hidden_state.mean(dim=1)
        pooled = acc_ref[...] * inv_seq_len                    # (b_tile, D) f32
        pooled_ref[...] = pooled

        # T5ClassificationHead.dense + ReLU (weights in their native dtype,
        # f32 MXU accumulation).
        x = jnp.dot(pooled.astype(w1_ref.dtype), w1_ref[...],
                    preferred_element_type=jnp.float32) + b1_ref[...]
        feat = jnp.maximum(x, 0.0)
        # TODO(synk): pooler dropout is identity here (eval semantics); training
        # mode dropout would use pltpu.prng_seed / pltpu.prng_random_bits.
        feat_ref[...] = feat

        # T5ClassificationHead.out_proj (classes zero-padded to lane width).
        logits = jnp.dot(feat.astype(w2_ref.dtype), w2_ref[...],
                         preferred_element_type=jnp.float32) + b2_ref[...]
        logits_ref[...] = logits

        # CrossEntropy per-row NLL against integer labels (no one-hot input).
        col = jax.lax.broadcasted_iota(jnp.int32, logits.shape, 1)
        valid = col < num_classes
        zm = jnp.where(valid, logits, jnp.float32(-1e30))
        m = jnp.max(zm, axis=-1, keepdims=True)
        z = zm - m
        lse = jnp.log(jnp.sum(jnp.where(valid, jnp.exp(z), 0.0),
                              axis=-1, keepdims=True))
        lbl = lbl_ref[...]                                     # (b_tile, 1) int32
        tgt = jnp.sum(jnp.where(col == lbl, z, 0.0), axis=-1, keepdims=True)
        nll = lse - tgt                                        # (b_tile, 1)
        nll_ref[...] = jnp.broadcast_to(nll, nll_ref.shape)    # lane-dense store


def ood_t5_detection_head(h, w1, b1, w2, b2, label_ids, gen_loss, lamda_loss,
                          *, b_tile=None, s_tile=None):
    """h: (B, S, D) encoder last hidden state; label_ids: (B,) int32."""
    B, S, D = h.shape
    C = w2.shape[1]
    C_pad = _round_up(C, 128)
    h_isz = jnp.dtype(h.dtype).itemsize
    w1_isz = jnp.dtype(w1.dtype).itemsize
    w2_isz = jnp.dtype(w2.dtype).itemsize

    # ---- generation-aware VMEM budget --------------------------------------
    try:
        vmem_cap = int(pltpu.get_tpu_info().vmem_capacity_bytes)
    except Exception:
        vmem_cap = 64 * 1024 * 1024          # assume the tightest (v7x) budget
    if vmem_cap >= 96 * 1024 * 1024:         # v5e / v6e: 128 MiB physical
        target_slab = 8 * 1024 * 1024
        vmem_ceiling = 96 * 1024 * 1024
    else:                                    # v7x: 64 MiB physical per TC
        target_slab = 4 * 1024 * 1024
        vmem_ceiling = 48 * 1024 * 1024

    # ---- B tiling: only exact covers, never pad h ---------------------------
    if b_tile is None:
        # small b_tile -> many "parallel" B blocks (feeds both v7x TCs) and a
        # larger contiguous s_tile; otherwise take the whole (possibly ragged)
        # batch as one full-dim block.
        b_tile = 8 if (B % 8 == 0 and B >= 16) else B
    if not (b_tile == B or (B % b_tile == 0 and b_tile % 8 == 0)):
        b_tile = B
    n_b = B // b_tile

    # ---- S tiling: prefer divisors of S; ragged tail masked in-kernel -------
    def pick_s_tile(cap_bytes):
        cap = max(8, cap_bytes // max(1, b_tile * D * h_isz))
        if cap >= S:
            return S
        cap8 = max(8, (cap // 8) * 8)
        for t in range(cap8, 7, -8):
            if S % t == 0:
                return t
        return cap8

    if s_tile is None:
        s_tile = pick_s_tile(target_slab)
    else:
        s_tile = int(s_tile)
        s_tile = S if s_tile >= S else max(8, (s_tile // 8) * 8)

    def vmem_est(s_t, w_bufs):
        h_bytes = b_tile * s_t * D * h_isz
        w_bytes = D * D * w1_isz + D * 4 + D * C_pad * w2_isz + C_pad * 4
        io_bytes = b_tile * (2 * D + C_pad + 128 + 1) * 4
        scratch = b_tile * D * 4
        return 2 * h_bytes + w_bufs * w_bytes + 2 * io_bytes + scratch

    # Shrink s_tile instead of silently clamping the limit below the estimate.
    while vmem_est(s_tile, 2) + (4 << 20) > vmem_ceiling and s_tile > 8:
        s_tile = max(8, ((s_tile // 2) // 8) * 8)

    mask_seq_tail = (S % s_tile) != 0
    n_s = pl.cdiv(S, s_tile)
    grid = (n_b, n_s)

    vmem_limit = int(min(vmem_ceiling,
                         max(32 * 1024 * 1024, vmem_est(s_tile, 2) + (4 << 20))))

    # f32 biases (added post-accumulation); weights keep their incoming dtype.
    b1p = b1.reshape(1, D).astype(jnp.float32)
    w2p = jnp.pad(w2, ((0, 0), (0, C_pad - C)))
    b2p = jnp.pad(b2.reshape(1, C).astype(jnp.float32), ((0, 0), (0, C_pad - C)))
    lbl = label_ids.astype(jnp.int32).reshape(B, 1)

    kernel = functools.partial(ood_head_kernel,
                               inv_seq_len=1.0 / float(S),
                               num_classes=int(C),
                               seq_len=int(S),
                               s_tile=int(s_tile),
                               mask_seq_tail=bool(mask_seq_tail))

    cost = pl.CostEstimate(
        flops=int(2 * B * S * D + 2 * B * D * D + 2 * B * D * C_pad),
        transcendentals=int(B * C_pad),
        bytes_accessed=int(B * S * D * h_isz
                           + D * D * w1_isz + D * C_pad * w2_isz
                           + (D + C_pad) * 4 + B * 4
                           + B * (2 * D + C_pad + 128) * 4),
    )

    def build(weight_mode):
        def wspec(shape):
            if weight_mode is None:
                return pl.BlockSpec(shape, lambda bi, si: (0, 0))
            return pl.BlockSpec(shape, lambda bi, si: (0, 0),
                                pipeline_mode=weight_mode)

        return pl.pallas_call(
            kernel,
            out_shape=(
                jax.ShapeDtypeStruct((B, D), jnp.float32),      # pooled hidden
                jax.ShapeDtypeStruct((B, D), jnp.float32),      # cls_features
                jax.ShapeDtypeStruct((B, C_pad), jnp.float32),  # cls_logits (padded)
                jax.ShapeDtypeStruct((B, 128), jnp.float32),    # per-row CE NLL
            ),
            grid_spec=pltpu.PrefetchScalarGridSpec(
                num_scalar_prefetch=0,
                grid=grid,
                in_specs=[
                    pl.BlockSpec((b_tile, s_tile, D), lambda bi, si: (bi, si, 0)),
                    wspec((D, D)),          # w1 resident across grid
                    wspec((1, D)),          # b1 resident
                    wspec((D, C_pad)),      # w2 resident
                    wspec((1, C_pad)),      # b2 resident
                    pl.BlockSpec((b_tile, 1), lambda bi, si: (bi, 0)),  # labels
                ],
                out_specs=(
                    pl.BlockSpec((b_tile, D), lambda bi, si: (bi, 0)),
                    pl.BlockSpec((b_tile, D), lambda bi, si: (bi, 0)),
                    pl.BlockSpec((b_tile, C_pad), lambda bi, si: (bi, 0)),
                    pl.BlockSpec((b_tile, 128), lambda bi, si: (bi, 0)),
                ),
                scratch_shapes=[pltpu.VMEM((b_tile, D), jnp.float32)],
            ),
            compiler_params=pltpu.CompilerParams(
                dimension_semantics=("parallel", "arbitrary"),
                vmem_limit_bytes=vmem_limit,
            ),
            cost_estimate=cost,
        )

    try:
        pooled, feat, logits, nll = build(pl.Buffered(1))(h, w1, b1p, w2p, b2p, lbl)
    except Exception:
        # TODO(synk): some jax builds reject pipeline_mode on pallas_call inputs;
        # fall back to default double-buffered weights (numerics identical).
        pooled, feat, logits, nll = build(None)(h, w1, b1p, w2p, b2p, lbl)

    # total_loss = gen_loss * lamda_loss + CrossEntropyLoss(mean) -- scalar math
    # done in the wrapper so no (1,1) scalars travel on the kernel vector path.
    cls_loss = jnp.mean(nll[:, 0])
    total_loss = jnp.asarray(gen_loss, jnp.float32) * jnp.float32(lamda_loss) + cls_loss
    return {
        "loss": total_loss,
        "feature": feat,
        "logits": logits[:, :C],
        "encoder_hidden": pooled,
    }


def _linear_init(key, fan_in, fan_out):
    """nn.Linear default init: U(-1/sqrt(fan_in), 1/sqrt(fan_in))."""
    kw, kb = jax.random.split(key)
    bound = 1.0 / jnp.sqrt(fan_in)
    w = jax.random.uniform(kw, (fan_in, fan_out), jnp.float32, -bound, bound)
    b = jax.random.uniform(kb, (fan_out,), jnp.float32, -bound, bound)
    return w, b


if __name__ == "__main__":
    # Small, T5-ish shapes.  S=36 with s_tile=8 exercises the ragged-tail mask;
    # B=16 with the default b_tile=8 exercises the multi-block parallel B axis.
    B, S, D = 16, 36, 128        # batch, seq, d_model
    num_labels = 8
    vocab = 32
    lamda_loss = 0.5

    key = jax.random.PRNGKey(0)
    k_ids, k_emb, k_dense, k_out, k_lbl = jax.random.split(key, 5)

    # TODO(synk): T5ForConditionalGeneration has no Pallas equivalent; synthesize
    # its encoder_last_hidden_state via a deterministic embedding lookup and use
    # a synthetic gen_loss scalar.
    input_ids = jax.random.randint(k_ids, (B, S), 0, vocab, dtype=jnp.int32)
    attention_mask = jnp.ones((B, S), dtype=jnp.int32)  # unused: .mean(dim=1) ignores it
    embedding = jax.random.normal(k_emb, (vocab, D), jnp.float32) * 0.02
    encoder_last_hidden_state = embedding[input_ids]      # (B, S, D)
    gen_loss = jnp.float32(2.3)

    # T5ClassificationHead params (input_dim=D, inner_dim=D, num_classes=num_labels).
    w_dense, b_dense = _linear_init(k_dense, D, D)
    w_out, b_out = _linear_init(k_out, D, num_labels)
    label_ids = jax.random.randint(k_lbl, (B,), 0, num_labels, dtype=jnp.int32)

    out = ood_t5_detection_head(encoder_last_hidden_state, w_dense, b_dense,
                                w_out, b_out, label_ids, gen_loss, lamda_loss,
                                s_tile=8)   # multi-step S grid with a ragged tail
    jax.block_until_ready(out)

    # Pure-JAX reference check of the head semantics.
    pooled_ref = encoder_last_hidden_state.mean(axis=1)
    with jax.default_matmul_precision("highest"):
        feat_ref = jnp.maximum(pooled_ref @ w_dense + b_dense, 0.0)
        logits_ref = feat_ref @ w_out + b_out
    logp = jax.nn.log_softmax(logits_ref, axis=-1)
    cls_loss_ref = -jnp.mean(logp[jnp.arange(B), label_ids])
    loss_ref = gen_loss * lamda_loss + cls_loss_ref

    assert jnp.allclose(out["encoder_hidden"], pooled_ref, atol=1e-5), "pooled mismatch"
    assert jnp.allclose(out["feature"], feat_ref, atol=1e-4), "feature mismatch"
    assert jnp.allclose(out["logits"], logits_ref, atol=1e-4), "logits mismatch"
    assert jnp.allclose(out["loss"], loss_ref, atol=1e-4), "loss mismatch"

    print("KERNEL_OK")
</pallas_src>

<mosaic_0001>
module attributes {stable_mosaic.version = 11 : i64} {
  func.func @ood_head_kernel(%arg0: i32, %arg1: i32, %arg2: memref<8x8x128xf32, #tpu.memory_space<vmem>>, %arg3: memref<128x128xf32, #tpu.memory_space<vmem>>, %arg4: memref<1x128xf32, #tpu.memory_space<vmem>>, %arg5: memref<128x128xf32, #tpu.memory_space<vmem>>, %arg6: memref<1x128xf32, #tpu.memory_space<vmem>>, %arg7: memref<8x1xi32, #tpu.memory_space<vmem>>, %arg8: memref<8x128xf32, #tpu.memory_space<vmem>>, %arg9: memref<8x128xf32, #tpu.memory_space<vmem>>, %arg10: memref<8x128xf32, #tpu.memory_space<vmem>>, %arg11: memref<8x128xf32, #tpu.memory_space<vmem>>, %arg12: memref<8x128xf32, #tpu.memory_space<vmem>>) attributes {dimension_semantics = [#tpu.dimension_semantics<parallel>, #tpu.dimension_semantics<arbitrary>], iteration_bounds = array<i64: 2, 5>, scalar_prefetch = 0 : i64, scratch_operands = 1 : i64, tpu.core_type = #tpu.core_type<tc>, window_params = [{transform_indices = @transform_0, window_bounds = array<i64: 8, 8, 128>}, {pipeline_mode = #tpu.pipeline_mode<synchronous>, transform_indices = @transform_1, window_bounds = array<i64: 128, 128>}, {pipeline_mode = #tpu.pipeline_mode<synchronous>, transform_indices = @transform_2, window_bounds = array<i64: 1, 128>}, {pipeline_mode = #tpu.pipeline_mode<synchronous>, transform_indices = @transform_3, window_bounds = array<i64: 128, 128>}, {pipeline_mode = #tpu.pipeline_mode<synchronous>, transform_indices = @transform_4, window_bounds = array<i64: 1, 128>}, {transform_indices = @transform_5, window_bounds = array<i64: 8, 1>}, {transform_indices = @transform_6, window_bounds = array<i64: 8, 128>}, {transform_indices = @transform_7, window_bounds = array<i64: 8, 128>}, {transform_indices = @transform_8, window_bounds = array<i64: 8, 128>}, {transform_indices = @transform_9, window_bounds = array<i64: 8, 128>}]} {
    %c0_i32 = arith.constant 0 : i32
    %0 = arith.cmpi eq, %arg1, %c0_i32 : i32
    %1 = arith.extui %0 : i1 to i32
    %c0_i32_0 = arith.constant 0 : i32
    %2 = arith.cmpi ne, %1, %c0_i32_0 : i32
    scf.if %2 {
      %cst_9 = arith.constant 0.000000e+00 : f32
      %19 = vector.broadcast %cst_9 : f32 to vector<8x128xf32>
      %c0_10 = arith.constant 0 : index
      %c0_11 = arith.constant 0 : index
      %20 = vector.load %arg12[%c0_10, %c0_11] : memref<8x128xf32, #tpu.memory_space<vmem>>, vector<8x128xf32>
      tpu.vector_store %arg12[%c0_10, %c0_11], %19 {strides = array<i32>} : memref<8x128xf32, #tpu.memory_space<vmem>>, vector<8x128xf32>,
    } else {
    }
    %c0 = arith.constant 0 : index
    %c0_1 = arith.constant 0 : index
    %c0_2 = arith.constant 0 : index
    %3 = vector.load %arg2[%c0, %c0_1, %c0_2] : memref<8x8x128xf32, #tpu.memory_space<vmem>>, vector<8x8x128xf32>
    %c8_i32 = arith.constant 8 : i32
    %4 = arith.muli %arg1, %c8_i32 : i32
    %5 = tpu.iota {dimensions = array<i32: 1>} : vector<8x8x128xi32>
    %6 = vector.broadcast %4 : i32 to vector<8x8x128xi32>
    %7 = arith.addi %6, %5 : vector<8x8x128xi32>
    %c36_i32 = arith.constant 36 : i32
    %8 = vector.broadcast %c36_i32 : i32 to vector<8x8x128xi32>
    %9 = arith.cmpi slt, %7, %8 : vector<8x8x128xi32>
    %cst = arith.constant 0.000000e+00 : f32
    %10 = vector.broadcast %cst : f32 to vector<8x8x128xf32>
    %11 = arith.select %9, %3, %10 : vector<8x8x128xi1>, vector<8x8x128xf32>
    %c0_3 = arith.constant 0 : index
    %c0_4 = arith.constant 0 : index
    %12 = vector.load %arg12[%c0_3, %c0_4] : memref<8x128xf32, #tpu.memory_space<vmem>>, vector<8x128xf32>
    %cst_5 = arith.constant dense<0.000000e+00> : vector<8x128xf32>
    %13 = vector.multi_reduction <add>, %11, %cst_5 [1] : vector<8x8x128xf32> to vector<8x128xf32>
    %14 = arith.addf %12, %13 : vector<8x128xf32>
    %c0_6 = arith.constant 0 : index
    %c0_7 = arith.constant 0 : index
    %15 = vector.load %arg12[%c0_6, %c0_7] : memref<8x128xf32, #tpu.memory_space<vmem>>, vector<8x128xf32>
    tpu.vector_store %arg12[%c0_6, %c0_7], %14 {strides = array<i32>} : memref<8x128xf32, #tpu.memory_space<vmem>>, vector<8x128xf32>,
    %c4_i32 = arith.constant 4 : i32
    %16 = arith.cmpi eq, %arg1, %c4_i32 : i32
    %17 = arith.extui %16 : i1 to i32
    %c0_i32_8 = arith.constant 0 : i32
    %18 = arith.cmpi ne, %17, %c0_i32_8 : i32
    scf.if %18 {
      %c0_9 = arith.constant 0 : index
      %c0_10 = arith.constant 0 : index
      %19 = vector.load %arg12[%c0_9, %c0_10] : memref<8x128xf32, #tpu.memory_space<vmem>>, vector<8x128xf32>
      %cst_11 = arith.constant 0.027777778 : f32
      %20 = vector.broadcast %cst_11 : f32 to vector<8x128xf32>
      %21 = arith.mulf %19, %20 : vector<8x128xf32>
      %c0_12 = arith.constant 0 : index
      %c0_13 = arith.constant 0 : index
      %22 = vector.load %arg8[%c0_12, %c0_13] : memref<8x128xf32, #tpu.memory_space<vmem>>, vector<8x128xf32>
      tpu.vector_store %arg8[%c0_12, %c0_13], %21 {strides = array<i32>} : memref<8x128xf32, #tpu.memory_space<vmem>>, vector<8x128xf32>,
      %c0_14 = arith.constant 0 : index
      %c0_15 = arith.constant 0 : index
      %23 = vector.load %arg3[%c0_14, %c0_15] : memref<128x128xf32, #tpu.memory_space<vmem>>, vector<128x128xf32>
      %cst_16 = arith.constant dense<0.000000e+00> : vector<8x128xf32>
      %24 = tpu.matmul %21, %23, %cst_16 {dimension_numbers = #tpu.dot_dimension_numbers<[1], [0], [0], [1], [0, 0, 1, 1], [], []>} : vector<8x128xf32>, vector<128x128xf32>, vector<8x128xf32> -> vector<8x128xf32>
      %c0_17 = arith.constant 0 : index
      %c0_18 = arith.constant 0 : index
      %25 = vector.load %arg4[%c0_17, %c0_18] : memref<1x128xf32, #tpu.memory_space<vmem>>, vector<1x128xf32>
      %26 = vector.broadcast %25 : vector<1x128xf32> to vector<8x128xf32>
      %27 = arith.addf %24, %26 : vector<8x128xf32>
      %cst_19 = arith.constant 0.000000e+00 : f32
      %28 = vector.broadcast %cst_19 : f32 to vector<8x128xf32>
      %29 = arith.maximumf %27, %28 : vector<8x128xf32>
      %c0_20 = arith.constant 0 : index
      %c0_21 = arith.constant 0 : index
      %30 = vector.load %arg9[%c0_20, %c0_21] : memref<8x128xf32, #tpu.memory_space<vmem>>, vector<8x128xf32>
      tpu.vector_store %arg9[%c0_20, %c0_21], %29 {strides = array<i32>} : memref<8x128xf32, #tpu.memory_space<vmem>>, vector<8x128xf32>,
      %c0_22 = arith.constant 0 : index
      %c0_23 = arith.constant 0 : index
      %31 = vector.load %arg5[%c0_22, %c0_23] : memref<128x128xf32, #tpu.memory_space<vmem>>, vector<128x128xf32>
      %cst_24 = arith.constant dense<0.000000e+00> : vector<8x128xf32>
      %32 = tpu.matmul %29, %31, %cst_24 {dimension_numbers = #tpu.dot_dimension_numbers<[1], [0], [0], [1], [0, 0, 1, 1], [], []>} : vector<8x128xf32>, vector<128x128xf32>, vector<8x128xf32> -> vector<8x128xf32>
      %c0_25 = arith.constant 0 : index
      %c0_26 = arith.constant 0 : index
      %33 = vector.load %arg6[%c0_25, %c0_26] : memref<1x128xf32, #tpu.memory_space<vmem>>, vector<1x128xf32>
      %34 = vector.broadcast %33 : vector<1x128xf32> to vector<8x128xf32>
      %35 = arith.addf %32, %34 : vector<8x128xf32>
      %c0_27 = arith.constant 0 : index
      %c0_28 = arith.constant 0 : index
      %36 = vector.load %arg10[%c0_27, %c0_28] : memref<8x128xf32, #tpu.memory_space<vmem>>, vector<8x128xf32>
      tpu.vector_store %arg10[%c0_27, %c0_28], %35 {strides = array<i32>} : memref<8x128xf32, #tpu.memory_space<vmem>>, vector<8x128xf32>,
      %37 = tpu.iota {dimensions = array<i32: 1>} : vector<8x128xi32>
      %c8_i32_29 = arith.constant 8 : i32
      %38 = vector.broadcast %c8_i32_29 : i32 to vector<8x128xi32>
      %39 = arith.cmpi slt, %37, %38 : vector<8x128xi32>
      %cst_30 = arith.constant -1.000000e+30 : f32
      %40 = vector.broadcast %cst_30 : f32 to vector<8x128xf32>
      %41 = arith.select %39, %35, %40 : vector<8x128xi1>, vector<8x128xf32>
      %cst_31 = arith.constant dense<0xFF800000> : vector<8xf32>
      %42 = vector.multi_reduction <maximumf>, %41, %cst_31 [1] : vector<8x128xf32> to vector<8xf32>
      %43 = vector.shape_cast %42 : vector<8xf32> to vector<8x1xf32>
      %44 = vector.broadcast %43 : vector<8x1xf32> to vector<8x128xf32>
      %45 = arith.subf %41, %44 : vector<8x128xf32>
      %46 = math.exp %45 : vector<8x128xf32>
      %cst_32 = arith.constant 0.000000e+00 : f32
      %47 = vector.broadcast %cst_32 : f32 to vector<8x128xf32>
      %48 = arith.select %39, %46, %47 : vector<8x128xi1>, vector<8x128xf32>
      %cst_33 = arith.constant dense<0.000000e+00> : vector<8xf32>
      %49 = vector.multi_reduction <add>, %48, %cst_33 [1] : vector<8x128xf32> to vector<8xf32>
      %50 = vector.shape_cast %49 : vector<8xf32> to vector<8x1xf32>
      %51 = math.log %50 : vector<8x1xf32>
      %c0_34 = arith.constant 0 : index
      %c0_35 = arith.constant 0 : index
      %52 = vector.load %arg7[%c0_34, %c0_35] : memref<8x1xi32, #tpu.memory_space<vmem>>, vector<8x1xi32>
      %53 = vector.broadcast %52 : vector<8x1xi32> to vector<8x128xi32>
      %54 = arith.cmpi eq, %37, %53 : vector<8x128xi32>
      %cst_36 = arith.constant 0.000000e+00 : f32
      %55 = vector.broadcast %cst_36 : f32 to vector<8x128xf32>
      %56 = arith.select %54, %45, %55 : vector<8x128xi1>, vector<8x128xf32>
      %cst_37 = arith.constant dense<0.000000e+00> : vector<8xf32>
      %57 = vector.multi_reduction <add>, %56, %cst_37 [1] : vector<8x128xf32> to vector<8xf32>
      %58 = vector.shape_cast %57 : vector<8xf32> to vector<8x1xf32>
      %59 = arith.subf %51, %58 : vector<8x1xf32>
      %60 = vector.shape_cast %59 : vector<8x1xf32> to vector<8x1xf32>
      %61 = vector.broadcast %60 : vector<8x1xf32> to vector<8x128xf32>
      %c0_38 = arith.constant 0 : index
      %c0_39 = arith.constant 0 : index
      %62 = vector.load %arg11[%c0_38, %c0_39] : memref<8x128xf32, #tpu.memory_space<vmem>>, vector<8x128xf32>
      tpu.vector_store %arg11[%c0_38, %c0_39], %61 {strides = array<i32>} : memref<8x128xf32, #tpu.memory_space<vmem>>, vector<8x128xf32>,
    } else {
    }
    return
  }
  func.func @transform_0(%arg0: i32, %arg1: i32) -> (i32, i32, i32) {
    %c0_i32 = arith.constant 0 : i32
    %c0_i32_0 = arith.constant 0 : i32
    return %arg0, %arg1, %c0_i32 : i32, i32, i32
  }
  func.func @transform_1(%arg0: i32, %arg1: i32) -> (i32, i32) {
    %c0_i32 = arith.constant 0 : i32
    %c0_i32_0 = arith.constant 0 : i32
    %c0_i32_1 = arith.constant 0 : i32
    return %c0_i32, %c0_i32_0 : i32, i32
  }
  func.func @transform_2(%arg0: i32, %arg1: i32) -> (i32, i32) {
    %c0_i32 = arith.constant 0 : i32
    %c0_i32_0 = arith.constant 0 : i32
    %c0_i32_1 = arith.constant 0 : i32
    return %c0_i32, %c0_i32_0 : i32, i32
  }
  func.func @transform_3(%arg0: i32, %arg1: i32) -> (i32, i32) {
    %c0_i32 = arith.constant 0 : i32
    %c0_i32_0 = arith.constant 0 : i32
    %c0_i32_1 = arith.constant 0 : i32
    return %c0_i32, %c0_i32_0 : i32, i32
  }
  func.func @transform_4(%arg0: i32, %arg1: i32) -> (i32, i32) {
    %c0_i32 = arith.constant 0 : i32
    %c0_i32_0 = arith.constant 0 : i32
    %c0_i32_1 = arith.constant 0 : i32
    return %c0_i32, %c0_i32_0 : i32, i32
  }
  func.func @transform_5(%arg0: i32, %arg1: i32) -> (i32, i32) {
    %c0_i32 = arith.constant 0 : i32
    %c0_i32_0 = arith.constant 0 : i32
    return %arg0, %c0_i32 : i32, i32
  }
  func.func @transform_6(%arg0: i32, %arg1: i32) -> (i32, i32) {
    %c0_i32 = arith.constant 0 : i32
    %c0_i32_0 = arith.constant 0 : i32
    return %arg0, %c0_i32 : i32, i32
  }
  func.func @transform_7(%arg0: i32, %arg1: i32) -> (i32, i32) {
    %c0_i32 = arith.constant 0 : i32
    %c0_i32_0 = arith.constant 0 : i32
    return %arg0, %c0_i32 : i32, i32
  }
  func.func @transform_8(%arg0: i32, %arg1: i32) -> (i32, i32) {
    %c0_i32 = arith.constant 0 : i32
    %c0_i32_0 = arith.constant 0 : i32
    return %arg0, %c0_i32 : i32, i32
  }
  func.func @transform_9(%arg0: i32, %arg1: i32) -> (i32, i32) {
    %c0_i32 = arith.constant 0 : i32
    %c0_i32_0 = arith.constant 0 : i32
    return %arg0, %c0_i32 : i32, i32
  }
}

module attributes {stable_mosaic.version = 11 : i64} {
  func.func @ood_head_kernel(%arg0: i32, %arg1: i32, %arg2: memref<8x8x128xf32, #tpu.memory_space<vmem>>, %arg3: memref<128x128xf32, #tpu.memory_space<vmem>>, %arg4: memref<1x128xf32, #tpu.memory_space<vmem>>, %arg5: memref<128x128xf32, #tpu.memory_space<vmem>>, %arg6: memref<1x128xf32, #tpu.memory_space<vmem>>, %arg7: memref<8x1xi32, #tpu.memory_space<vmem>>, %arg8: memref<8x128xf32, #tpu.memory_space<vmem>>, %arg9: memref<8x128xf32, #tpu.memory_space<vmem>>, %arg10: memref<8x128xf32, #tpu.memory_space<vmem>>, %arg11: memref<8x128xf32, #tpu.memory_space<vmem>>, %arg12: memref<8x128xf32, #tpu.memory_space<vmem>>) attributes {dimension_semantics = [#tpu.dimension_semantics<parallel>, #tpu.dimension_semantics<arbitrary>], iteration_bounds = array<i64: 2, 5>, scalar_prefetch = 0 : i64, scratch_operands = 1 : i64, tpu.core_type = #tpu.core_type<tc>, window_params = [{transform_indices = @transform_0, window_bounds = array<i64: 8, 8, 128>}, {pipeline_mode = #tpu.pipeline_mode<synchronous>, transform_indices = @transform_1, window_bounds = array<i64: 128, 128>}, {pipeline_mode = #tpu.pipeline_mode<synchronous>, transform_indices = @transform_2, window_bounds = array<i64: 1, 128>}, {pipeline_mode = #tpu.pipeline_mode<synchronous>, transform_indices = @transform_3, window_bounds = array<i64: 128, 128>}, {pipeline_mode = #tpu.pipeline_mode<synchronous>, transform_indices = @transform_4, window_bounds = array<i64: 1, 128>}, {transform_indices = @transform_5, window_bounds = array<i64: 8, 1>}, {transform_indices = @transform_6, window_bounds = array<i64: 8, 128>}, {transform_indices = @transform_7, window_bounds = array<i64: 8, 128>}, {transform_indices = @transform_8, window_bounds = array<i64: 8, 128>}, {transform_indices = @transform_9, window_bounds = array<i64: 8, 128>}]} {
    %c0_i32 = arith.constant 0 : i32
    %0 = arith.cmpi eq, %arg1, %c0_i32 : i32
    %1 = arith.extui %0 : i1 to i32
    %c0_i32_0 = arith.constant 0 : i32
    %2 = arith.cmpi ne, %1, %c0_i32_0 : i32
    scf.if %2 {
      %cst_9 = arith.constant 0.000000e+00 : f32
      %19 = vector.broadcast %cst_9 : f32 to vector<8x128xf32>
      %c0_10 = arith.constant 0 : index
      %c0_11 = arith.constant 0 : index
      %20 = vector.load %arg12[%c0_10, %c0_11] : memref<8x128xf32, #tpu.memory_space<vmem>>, vector<8x128xf32>
      tpu.vector_store %arg12[%c0_10, %c0_11], %19 {strides = array<i32>} : memref<8x128xf32, #tpu.memory_space<vmem>>, vector<8x128xf32>,
    } else {
    }
    %c0 = arith.constant 0 : index
    %c0_1 = arith.constant 0 : index
    %c0_2 = arith.constant 0 : index
    %3 = vector.load %arg2[%c0, %c0_1, %c0_2] : memref<8x8x128xf32, #tpu.memory_space<vmem>>, vector<8x8x128xf32>
    %c8_i32 = arith.constant 8 : i32
    %4 = arith.muli %arg1, %c8_i32 : i32
    %5 = tpu.iota {dimensions = array<i32: 1>} : vector<8x8x128xi32>
    %6 = vector.broadcast %4 : i32 to vector<8x8x128xi32>
    %7 = arith.addi %6, %5 : vector<8x8x128xi32>
    %c36_i32 = arith.constant 36 : i32
    %8 = vector.broadcast %c36_i32 : i32 to vector<8x8x128xi32>
    %9 = arith.cmpi slt, %7, %8 : vector<8x8x128xi32>
    %cst = arith.constant 0.000000e+00 : f32
    %10 = vector.broadcast %cst : f32 to vector<8x8x128xf32>
    %11 = arith.select %9, %3, %10 : vector<8x8x128xi1>, vector<8x8x128xf32>
    %c0_3 = arith.constant 0 : index
    %c0_4 = arith.constant 0 : index
    %12 = vector.load %arg12[%c0_3, %c0_4] : memref<8x128xf32, #tpu.memory_space<vmem>>, vector<8x128xf32>
    %cst_5 = arith.constant dense<0.000000e+00> : vector<8x128xf32>
    %13 = vector.multi_reduction <add>, %11, %cst_5 [1] : vector<8x8x128xf32> to vector<8x128xf32>
    %14 = arith.addf %12, %13 : vector<8x128xf32>
    %c0_6 = arith.constant 0 : index
    %c0_7 = arith.constant 0 : index
    %15 = vector.load %arg12[%c0_6, %c0_7] : memref<8x128xf32, #tpu.memory_space<vmem>>, vector<8x128xf32>
    tpu.vector_store %arg12[%c0_6, %c0_7], %14 {strides = array<i32>} : memref<8x128xf32, #tpu.memory_space<vmem>>, vector<8x128xf32>,
    %c4_i32 = arith.constant 4 : i32
    %16 = arith.cmpi eq, %arg1, %c4_i32 : i32
    %17 = arith.extui %16 : i1 to i32
    %c0_i32_8 = arith.constant 0 : i32
    %18 = arith.cmpi ne, %17, %c0_i32_8 : i32
    scf.if %18 {
      %c0_9 = arith.constant 0 : index
      %c0_10 = arith.constant 0 : index
      %19 = vector.load %arg12[%c0_9, %c0_10] : memref<8x128xf32, #tpu.memory_space<vmem>>, vector<8x128xf32>
      %cst_11 = arith.constant 0.027777778 : f32
      %20 = vector.broadcast %cst_11 : f32 to vector<8x128xf32>
      %21 = arith.mulf %19, %20 : vector<8x128xf32>
      %c0_12 = arith.constant 0 : index
      %c0_13 = arith.constant 0 : index
      %22 = vector.load %arg8[%c0_12, %c0_13] : memref<8x128xf32, #tpu.memory_space<vmem>>, vector<8x128xf32>
      tpu.vector_store %arg8[%c0_12, %c0_13], %21 {strides = array<i32>} : memref<8x128xf32, #tpu.memory_space<vmem>>, vector<8x128xf32>,
      %c0_14 = arith.constant 0 : index
      %c0_15 = arith.constant 0 : index
      %23 = vector.load %arg3[%c0_14, %c0_15] : memref<128x128xf32, #tpu.memory_space<vmem>>, vector<128x128xf32>
      %cst_16 = arith.constant dense<0.000000e+00> : vector<8x128xf32>
      %24 = tpu.matmul %21, %23, %cst_16 {dimension_numbers = #tpu.dot_dimension_numbers<[1], [0], [0], [1], [0, 0, 1, 1], [], []>} : vector<8x128xf32>, vector<128x128xf32>, vector<8x128xf32> -> vector<8x128xf32>
      %c0_17 = arith.constant 0 : index
      %c0_18 = arith.constant 0 : index
      %25 = vector.load %arg4[%c0_17, %c0_18] : memref<1x128xf32, #tpu.memory_space<vmem>>, vector<1x128xf32>
      %26 = vector.broadcast %25 : vector<1x128xf32> to vector<8x128xf32>
      %27 = arith.addf %24, %26 : vector<8x128xf32>
      %cst_19 = arith.constant 0.000000e+00 : f32
      %28 = vector.broadcast %cst_19 : f32 to vector<8x128xf32>
      %29 = arith.maximumf %27, %28 : vector<8x128xf32>
      %c0_20 = arith.constant 0 : index
      %c0_21 = arith.constant 0 : index
      %30 = vector.load %arg9[%c0_20, %c0_21] : memref<8x128xf32, #tpu.memory_space<vmem>>, vector<8x128xf32>
      tpu.vector_store %arg9[%c0_20, %c0_21], %29 {strides = array<i32>} : memref<8x128xf32, #tpu.memory_space<vmem>>, vector<8x128xf32>,
      %c0_22 = arith.constant 0 : index
      %c0_23 = arith.constant 0 : index
      %31 = vector.load %arg5[%c0_22, %c0_23] : memref<128x128xf32, #tpu.memory_space<vmem>>, vector<128x128xf32>
      %cst_24 = arith.constant dense<0.000000e+00> : vector<8x128xf32>
      %32 = tpu.matmul %29, %31, %cst_24 {dimension_numbers = #tpu.dot_dimension_numbers<[1], [0], [0], [1], [0, 0, 1, 1], [], []>} : vector<8x128xf32>, vector<128x128xf32>, vector<8x128xf32> -> vector<8x128xf32>
      %c0_25 = arith.constant 0 : index
      %c0_26 = arith.constant 0 : index
      %33 = vector.load %arg6[%c0_25, %c0_26] : memref<1x128xf32, #tpu.memory_space<vmem>>, vector<1x128xf32>
      %34 = vector.broadcast %33 : vector<1x128xf32> to vector<8x128xf32>
      %35 = arith.addf %32, %34 : vector<8x128xf32>
      %c0_27 = arith.constant 0 : index
      %c0_28 = arith.constant 0 : index
      %36 = vector.load %arg10[%c0_27, %c0_28] : memref<8x128xf32, #tpu.memory_space<vmem>>, vector<8x128xf32>
      tpu.vector_store %arg10[%c0_27, %c0_28], %35 {strides = array<i32>} : memref<8x128xf32, #tpu.memory_space<vmem>>, vector<8x128xf32>,
      %37 = tpu.iota {dimensions = array<i32: 1>} : vector<8x128xi32>
      %c8_i32_29 = arith.constant 8 : i32
      %38 = vector.broadcast %c8_i32_29 : i32 to vector<8x128xi32>
      %39 = arith.cmpi slt, %37, %38 : vector<8x128xi32>
      %cst_30 = arith.constant -1.000000e+30 : f32
      %40 = vector.broadcast %cst_30 : f32 to vector<8x128xf32>
      %41 = arith.select %39, %35, %40 : vector<8x128xi1>, vector<8x128xf32>
      %cst_31 = arith.constant dense<0xFF800000> : vector<8xf32>
      %42 = vector.multi_reduction <maximumf>, %41, %cst_31 [1] : vector<8x128xf32> to vector<8xf32>
      %43 = vector.shape_cast %42 : vector<8xf32> to vector<8x1xf32>
      %44 = vector.broadcast %43 : vector<8x1xf32> to vector<8x128xf32>
      %45 = arith.subf %41, %44 : vector<8x128xf32>
      %46 = math.exp %45 : vector<8x128xf32>
      %cst_32 = arith.constant 0.000000e+00 : f32
      %47 = vector.broadcast %cst_32 : f32 to vector<8x128xf32>
      %48 = arith.select %39, %46, %47 : vector<8x128xi1>, vector<8x128xf32>
      %cst_33 = arith.constant dense<0.000000e+00> : vector<8xf32>
      %49 = vector.multi_reduction <add>, %48, %cst_33 [1] : vector<8x128xf32> to vector<8xf32>
      %50 = vector.shape_cast %49 : vector<8xf32> to vector<8x1xf32>
      %51 = math.log %50 : vector<8x1xf32>
      %c0_34 = arith.constant 0 : index
      %c0_35 = arith.constant 0 : index
      %52 = vector.load %arg7[%c0_34, %c0_35] : memref<8x1xi32, #tpu.memory_space<vmem>>, vector<8x1xi32>
      %53 = vector.broadcast %52 : vector<8x1xi32> to vector<8x128xi32>
      %54 = arith.cmpi eq, %37, %53 : vector<8x128xi32>
      %cst_36 = arith.constant 0.000000e+00 : f32
      %55 = vector.broadcast %cst_36 : f32 to vector<8x128xf32>
      %56 = arith.select %54, %45, %55 : vector<8x128xi1>, vector<8x128xf32>
      %cst_37 = arith.constant dense<0.000000e+00> : vector<8xf32>
      %57 = vector.multi_reduction <add>, %56, %cst_37 [1] : vector<8x128xf32> to vector<8xf32>
      %58 = vector.shape_cast %57 : vector<8xf32> to vector<8x1xf32>
      %59 = arith.subf %51, %58 : vector<8x1xf32>
      %60 = vector.shape_cast %59 : vector<8x1xf32> to vector<8x1xf32>
      %61 = vector.broadcast %60 : vector<8x1xf32> to vector<8x128xf32>
      %c0_38 = arith.constant 0 : index
      %c0_39 = arith.constant 0 : index
      %62 = vector.load %arg11[%c0_38, %c0_39] : memref<8x128xf32, #tpu.memory_space<vmem>>, vector<8x128xf32>
      tpu.vector_store %arg11[%c0_38, %c0_39], %61 {strides = array<i32>} : memref<8x128xf32, #tpu.memory_space<vmem>>, vector<8x128xf32>,
    } else {
    }
    return
  }
  func.func @transform_0(%arg0: i32, %arg1: i32) -> (i32, i32, i32) {
    %c0_i32 = arith.constant 0 : i32
    %c0_i32_0 = arith.constant 0 : i32
    return %arg0, %arg1, %c0_i32 : i32, i32, i32
  }
  func.func @transform_1(%arg0: i32, %arg1: i32) -> (i32, i32) {
    %c0_i32 = arith.constant 0 : i32
    %c0_i32_0 = arith.constant 0 : i32
    %c0_i32_1 = arith.constant 0 : i32
    return %c0_i32, %c0_i32_0 : i32, i32
  }
  func.func @transform_2(%arg0: i32, %arg1: i32) -> (i32, i32) {
    %c0_i32 = arith.constant 0 : i32
    %c0_i32_0 = arith.constant 0 : i32
    %c0_i32_1 = arith.constant 0 : i32
    return %c0_i32, %c0_i32_0 : i32, i32
  }
  func.func @transform_3(%arg0: i32, %arg1: i32) -> (i32, i32) {
    %c0_i32 = arith.constant 0 : i32
    %c0_i32_0 = arith.constant 0 : i32
    %c0_i32_1 = arith.constant 0 : i32
    return %c0_i32, %c0_i32_0 : i32, i32
  }
  func.func @transform_4(%arg0: i32, %arg1: i32) -> (i32, i32) {
    %c0_i32 = arith.constant 0 : i32
    %c0_i32_0 = arith.constant 0 : i32
    %c0_i32_1 = arith.constant 0 : i32
    return %c0_i32, %c0_i32_0 : i32, i32
  }
  func.func @transform_5(%arg0: i32, %arg1: i32) -> (i32, i32) {
    %c0_i32 = arith.constant 0 : i32
    %c0_i32_0 = arith.constant 0 : i32
    return %arg0, %c0_i32 : i32, i32
  }
  func.func @transform_6(%arg0: i32, %arg1: i32) -> (i32, i32) {
    %c0_i32 = arith.constant 0 : i32
    %c0_i32_0 = arith.constant 0 : i32
    return %arg0, %c0_i32 : i32, i32
  }
  func.func @transform_7(%arg0: i32, %arg1: i32) -> (i32, i32) {
    %c0_i32 = arith.constant 0 : i32
    %c0_i32_0 = arith.constant 0 : i32
    return %arg0, %c0_i32 : i32, i32
  }
  func.func @transform_8(%arg0: i32, %arg1: i32) -> (i32, i32) {
    %c0_i32 = arith.constant 0 : i32
    %c0_i32_0 = arith.constant 0 : i32
    return %arg0, %c0_i32 : i32, i32
  }
  func.func @transform_9(%arg0: i32, %arg1: i32) -> (i32, i32) {
    %c0_i32 = arith.constant 0 : i32
    %c0_i32_0 = arith.constant 0 : i32
    return %arg0, %c0_i32 : i32, i32
  }
}

</mosaic_0001>

<llo_original>
// kernel: tpu_custom_call.1
$region0: #{tpu_custom_call.1}
  #allocation0 [shape = 'u32[]', space=smem, size = 0x4, offset = 0x4, fixed_abs, tag = 'smem constant byte address 0x4 - core index']
  #allocation1 [shape = 'u32[144,128]{1,0:T(1,128)}', space=vmem, size = 0x12000, scoped, tag = 'internal scratch']
  #allocation2 [shape = 'f32[8,128]{1,0:T(8,128)}', space=vmem, size = 0x1000, scoped, tag = 'scratch operand']
  %s0 = inlined_call_operand.vmem [shape: f32[16,36,128], index: 0, kind: input, shape index: {}]
  %s1 = inlined_call_operand.vmem [shape: f32[128,128], index: 1, kind: input, shape index: {}]
  %s2 = inlined_call_operand.vmem [shape: f32[1,128], index: 2, kind: input, shape index: {}]
  %s3 = inlined_call_operand.vmem [shape: f32[128,128], index: 3, kind: input, shape index: {}]
  %s4 = inlined_call_operand.vmem [shape: f32[1,128], index: 4, kind: input, shape index: {}]
  %s5 = inlined_call_operand.vmem [shape: s32[16,1], index: 5, kind: input, shape index: {}]
  %s6 = inlined_call_operand.hbm [shape: f32[16,128], index: 6, kind: output, shape index: {0}]
  %s7 = inlined_call_operand.hbm [shape: f32[16,128], index: 7, kind: output, shape index: {1}]
  %s8 = inlined_call_operand.hbm [shape: f32[16,128], index: 8, kind: output, shape index: {2}]
  %s9 = inlined_call_operand.hbm [shape: f32[16,128], index: 9, kind: output, shape index: {3}]
  %10 = xla_tuple %s6, %s7, %s8, %s9
  %s11 = sld [smem:[#allocation0]]
  $region127: #{tpu_custom_call.1} parent=0
    _
  %s13 = ssub.s32 1, %s11
  %s14 = scalar_select 0, %s13, %s11
  $region1: #{tpu_custom_call.1} parent=0
    #allocation3 [shape = 'u8[65536]{0}', space=vmem, size = 0x10000, scoped, tag = 'input window, operand 0']
    #allocation4 [shape = 'u8[8192]{0}', space=vmem, size = 0x2000, scoped, tag = 'output window, operand 0']
    #allocation5 [shape = 's32[2]{0}', space=sflag, size = 0x8, scoped, tag = 'scoped memory for tpu_custom_call.1']
    #allocation6 [shape = 'u8[8192]{0}', space=vmem, size = 0x2000, scoped, tag = 'output window, operand 1']
    #allocation7 [shape = 's32[2]{0}', space=sflag, size = 0x8, scoped, tag = 'scoped memory for tpu_custom_call.1']
    #allocation8 [shape = 'u8[8192]{0}', space=vmem, size = 0x2000, scoped, tag = 'output window, operand 2']
    #allocation9 [shape = 'u8[8192]{0}', space=vmem, size = 0x2000, scoped, tag = 'output window, operand 3']
    #allocation10 [shape = 's32[2]{0}', space=sflag, size = 0x8, scoped, tag = 'scoped memory for tpu_custom_call.1']
    %15 = vsyncpa [#allocation5], 0
    %s16 = scalar_lea.sflag [#allocation5], 1
    %17 = vsyncpa %s16, 0
    %18 = vsyncpa [#allocation7], 0
    %s19 = scalar_lea.sflag [#allocation7], 1
    %20 = vsyncpa %s19, 0
    %21 = vsyncpa [#allocation10], 0
    %s22 = scalar_lea.sflag [#allocation10], 1
    %23 = vsyncpa %s22, 0
    loop: start=0, step=1, limit=12
    $region2: #{tpu_custom_call.1} parent=1 // loop_pre_header
      _
    $region3: #{tpu_custom_call.1} parent=1 // loop_header
      %s25 = sphi 0, %s29
      %p26 = scmp.ge.s32.totalorder %s25, 12
      %s32 = sphi 0, %s44
      %s33 = sphi 0, %s40
      %s34 = sphi 0, %s32
      %s35 = sphi 0, %s33
      %s36 = sphi 0, %s34
      %s37 = sphi 0, %s35
      %s49 = sphi 0, %s51
      %s52 = sphi 0, %s49
      %s53 = sphi 0, %s52
      %s69 = sphi 0, %s53
      %s73 = sphi 0, %s73
      %s75 = sphi 0, %s73
      %s76 = sphi 0, %s75
      %s90 = sphi 0, %s76
      %s94 = sphi 0, %s94
      %s96 = sphi 0, %s94
      %s97 = sphi 0, %s96
      %s111 = sphi 0, %s97
      %s115 = sphi 0, %s115
      %s117 = sphi 0, %s115
      %s118 = sphi 0, %s117
      %s132 = sphi 0, %s118
      %s136 = sphi 0, %s136
      %s138 = sphi 0, %s136
      %s139 = sphi 0, %s138
      %s153 = sphi 0, %s139
      %s159 = sphi 0, %s161
      %s162 = sphi 0, %s159
      %s163 = sphi 0, %s162
      %s179 = sphi 0, %s163
      %s185 = sphi 0, %s187
      %s188 = sphi 0, %s185
      %s189 = sphi 0, %s188
      %s205 = sphi 0, %s189
      %s211 = sphi 0, %s213
      %s214 = sphi 0, %s211
      %s215 = sphi 0, %s214
      %s231 = sphi 0, %s215
      %s237 = sphi 0, %s239
      %s240 = sphi 0, %s237
      %s241 = sphi 0, %s240
      %s257 = sphi 0, %s241
      %s263 = sphi 0, %s265
      %s266 = sphi 0, %s263
      %s267 = sphi 0, %s266
      %s283 = sphi 0, %s267
    $region4: #{tpu_custom_call.1} parent=1 // loop_header_branch
      %28 = sbr.rel (%p26) target = $region8
    $region5: #{tpu_custom_call.1} parent=1 // loop_body
      %s30 = ssub.s32 %s25, 1
      %s31 = ssub.s32 %s25, 2
      %s38 = sadd.s32 1, %s33
      %p39 = scmp.ge.s32.totalorder %s38, 5
      %s40 = scalar_select %p39, 0, %s38
      %s41 = sadd.s32 1, %s32
      %s42 = scalar_select %p39, %s41, %s32
      %p43 = scmp.ge.s32.totalorder %s42, 2
      %s44 = scalar_select %p43, 0, %s42
      %s45 = ssub.s32 %s32, %s44
      %s46 = ssub.s32 %s33, %s40
      %s47 = sor.u32 %s45, %s46
      %p48 = scmp.eq.s32.totalorder %s47, 0
      %s50 = sadd.s32 %s49, 1
      %s51 = scalar_select %p48, %s49, %s50
      %p54 = pneg %p48
      %p55 = scmp.eq.s32.totalorder %s25, 9
      %p56 = por %p54, %p55
      %p57 = scmp.ne.s32.totalorder %s49, %s52
      %p58 = scmp.eq.s32.totalorder %s25, 0
      %p59 = por %p57, %p58
      %p60 = scmp.ne.s32.totalorder %s49, %s52
      %p61 = scmp.eq.s32.totalorder %s30, 9
      %p62 = por %p60, %p61
      %p63 = scmp.ne.s32.totalorder %s52, %s53
      %p64 = scmp.eq.s32.totalorder %s30, 0
      %p65 = por %p63, %p64
      %p66 = scmp.ne.s32.totalorder %s52, %s53
      %p67 = scmp.eq.s32.totalorder %s31, 9
      %p68 = por %p66, %p67
      %p70 = scmp.ne.s32.totalorder %s53, %s69
      %p71 = scmp.eq.s32.totalorder %s31, 0
      %p72 = por %p70, %p71
      %s74 = sadd.s32 %s73, 1
      %p77 = scmp.eq.s32.totalorder %s25, 9
      %p78 = scmp.ne.s32.totalorder %s73, %s75
      %p79 = scmp.eq.s32.totalorder %s25, 0
      %p80 = por %p78, %p79
      %p81 = scmp.ne.s32.totalorder %s73, %s75
      %p82 = scmp.eq.s32.totalorder %s30, 9
      %p83 = por %p81, %p82
      %p84 = scmp.ne.s32.totalorder %s75, %s76
      %p85 = scmp.eq.s32.totalorder %s30, 0
      %p86 = por %p84, %p85
      %p87 = scmp.ne.s32.totalorder %s75, %s76
      %p88 = scmp.eq.s32.totalorder %s31, 9
      %p89 = por %p87, %p88
      %p91 = scmp.ne.s32.totalorder %s76, %s90
      %p92 = scmp.eq.s32.totalorder %s31, 0
      %p93 = por %p91, %p92
      %s95 = sadd.s32 %s94, 1
      %p98 = scmp.eq.s32.totalorder %s25, 9
      %p99 = scmp.ne.s32.totalorder %s94, %s96
      %p100 = scmp.eq.s32.totalorder %s25, 0
      %p101 = por %p99, %p100
      %p102 = scmp.ne.s32.totalorder %s94, %s96
      %p103 = scmp.eq.s32.totalorder %s30, 9
      %p104 = por %p102, %p103
      %p105 = scmp.ne.s32.totalorder %s96, %s97
      %p106 = scmp.eq.s32.totalorder %s30, 0
      %p107 = por %p105, %p106
      %p108 = scmp.ne.s32.totalorder %s96, %s97
      %p109 = scmp.eq.s32.totalorder %s31, 9
      %p110 = por %p108, %p109
      %p112 = scmp.ne.s32.totalorder %s97, %s111
      %p113 = scmp.eq.s32.totalorder %s31, 0
      %p114 = por %p112, %p113
      %s116 = sadd.s32 %s115, 1
      %p119 = scmp.eq.s32.totalorder %s25, 9
      %p120 = scmp.ne.s32.totalorder %s115, %s117
      %p121 = scmp.eq.s32.totalorder %s25, 0
      %p122 = por %p120, %p121
      %p123 = scmp.ne.s32.totalorder %s115, %s117
      %p124 = scmp.eq.s32.totalorder %s30, 9
      %p125 = por %p123, %p124
      %p126 = scmp.ne.s32.totalorder %s117, %s118
      %p127 = scmp.eq.s32.totalorder %s30, 0
      %p128 = por %p126, %p127
      %p129 = scmp.ne.s32.totalorder %s117, %s118
      %p130 = scmp.eq.s32.totalorder %s31, 9
      %p131 = por %p129, %p130
      %p133 = scmp.ne.s32.totalorder %s118, %s132
      %p134 = scmp.eq.s32.totalorder %s31, 0
      %p135 = por %p133, %p134
      %s137 = sadd.s32 %s136, 1
      %p140 = scmp.eq.s32.totalorder %s25, 9
      %p141 = scmp.ne.s32.totalorder %s136, %s138
      %p142 = scmp.eq.s32.totalorder %s25, 0
      %p143 = por %p141, %p142
      %p144 = scmp.ne.s32.totalorder %s136, %s138
      %p145 = scmp.eq.s32.totalorder %s30, 9
      %p146 = por %p144, %p145
      %p147 = scmp.ne.s32.totalorder %s138, %s139
      %p148 = scmp.eq.s32.totalorder %s30, 0
      %p149 = por %p147, %p148
      %p150 = scmp.ne.s32.totalorder %s138, %s139
      %p151 = scmp.eq.s32.totalorder %s31, 9
      %p152 = por %p150, %p151
      %p154 = scmp.ne.s32.totalorder %s139, %s153
      %p155 = scmp.eq.s32.totalorder %s31, 0
      %p156 = por %p154, %p155
      %s157 = ssub.s32 %s32, %s44
      %p158 = scmp.eq.s32.totalorder %s157, 0
      %s160 = sadd.s32 %s159, 1
      %s161 = scalar_select %p158, %s159, %s160
      %p164 = pneg %p158
      %p165 = scmp.eq.s32.totalorder %s25, 9
      %p166 = por %p164, %p165
      %p167 = scmp.ne.s32.totalorder %s159, %s162
      %p168 = scmp.eq.s32.totalorder %s25, 0
      %p169 = por %p167, %p168
      %p170 = scmp.ne.s32.totalorder %s159, %s162
      %p171 = scmp.eq.s32.totalorder %s30, 9
      %p172 = por %p170, %p171
      %p173 = scmp.ne.s32.totalorder %s162, %s163
      %p174 = scmp.eq.s32.totalorder %s30, 0
      %p175 = por %p173, %p174
      %p176 = scmp.ne.s32.totalorder %s162, %s163
      %p177 = scmp.eq.s32.totalorder %s31, 9
      %p178 = por %p176, %p177
      %p180 = scmp.ne.s32.totalorder %s163, %s179
      %p181 = scmp.eq.s32.totalorder %s31, 0
      %p182 = por %p180, %p181
      %s183 = ssub.s32 %s32, %s44
      %p184 = scmp.eq.s32.totalorder %s183, 0
      %s186 = sadd.s32 %s185, 1
      %s187 = scalar_select %p184, %s185, %s186
      %p190 = pneg %p184
      %p191 = scmp.eq.s32.totalorder %s25, 9
      %p192 = por %p190, %p191
      %p193 = scmp.ne.s32.totalorder %s185, %s188
      %p194 = scmp.eq.s32.totalorder %s25, 0
      %p195 = por %p193, %p194
      %p196 = scmp.ne.s32.totalorder %s185, %s188
      %p197 = scmp.eq.s32.totalorder %s30, 9
      %p198 = por %p196, %p197
      %p199 = scmp.ne.s32.totalorder %s188, %s189
      %p200 = scmp.eq.s32.totalorder %s30, 0
      %p201 = por %p199, %p200
      %p202 = scmp.ne.s32.totalorder %s188, %s189
      %p203 = scmp.eq.s32.totalorder %s31, 9
      %p204 = por %p202, %p203
      %p206 = scmp.ne.s32.totalorder %s189, %s205
      %p207 = scmp.eq.s32.totalorder %s31, 0
      %p208 = por %p206, %p207
      %s209 = ssub.s32 %s32, %s44
      %p210 = scmp.eq.s32.totalorder %s209, 0
      %s212 = sadd.s32 %s211, 1
      %s213 = scalar_select %p210, %s211, %s212
      %p216 = pneg %p210
      %p217 = scmp.eq.s32.totalorder %s25, 9
      %p218 = por %p216, %p217
      %p219 = scmp.ne.s32.totalorder %s211, %s214
      %p220 = scmp.eq.s32.totalorder %s25, 0
      %p221 = por %p219, %p220
      %p222 = scmp.ne.s32.totalorder %s211, %s214
      %p223 = scmp.eq.s32.totalorder %s30, 9
      %p224 = por %p222, %p223
      %p225 = scmp.ne.s32.totalorder %s214, %s215
      %p226 = scmp.eq.s32.totalorder %s30, 0
      %p227 = por %p225, %p226
      %p228 = scmp.ne.s32.totalorder %s214, %s215
      %p229 = scmp.eq.s32.totalorder %s31, 9
      %p230 = por %p228, %p229
      %p232 = scmp.ne.s32.totalorder %s215, %s231
      %p233 = scmp.eq.s32.totalorder %s31, 0
      %p234 = por %p232, %p233
      %s235 = ssub.s32 %s32, %s44
      %p236 = scmp.eq.s32.totalorder %s235, 0
      %s238 = sadd.s32 %s237, 1
      %s239 = scalar_select %p236, %s237, %s238
      %p242 = pneg %p236
      %p243 = scmp.eq.s32.totalorder %s25, 9
      %p244 = por %p242, %p243
      %p245 = scmp.ne.s32.totalorder %s237, %s240
      %p246 = scmp.eq.s32.totalorder %s25, 0
      %p247 = por %p245, %p246
      %p248 = scmp.ne.s32.totalorder %s237, %s240
      %p249 = scmp.eq.s32.totalorder %s30, 9
      %p250 = por %p248, %p249
      %p251 = scmp.ne.s32.totalorder %s240, %s241
      %p252 = scmp.eq.s32.totalorder %s30, 0
      %p253 = por %p251, %p252
      %p254 = scmp.ne.s32.totalorder %s240, %s241
      %p255 = scmp.eq.s32.totalorder %s31, 9
      %p256 = por %p254, %p255
      %p258 = scmp.ne.s32.totalorder %s241, %s257
      %p259 = scmp.eq.s32.totalorder %s31, 0
      %p260 = por %p258, %p259
      %s261 = ssub.s32 %s32, %s44
      %p262 = scmp.eq.s32.totalorder %s261, 0
      %s264 = sadd.s32 %s263, 1
      %s265 = scalar_select %p262, %s263, %s264
      %p268 = pneg %p262
      %p269 = scmp.eq.s32.totalorder %s25, 9
      %p270 = por %p268, %p269
      %p271 = scmp.ne.s32.totalorder %s263, %s266
      %p272 = scmp.eq.s32.totalorder %s25, 0
      %p273 = por %p271, %p272
      %p274 = scmp.ne.s32.totalorder %s263, %s266
      %p275 = scmp.eq.s32.totalorder %s30, 9
      %p276 = por %p274, %p275
      %p277 = scmp.ne.s32.totalorder %s266, %s267
      %p278 = scmp.eq.s32.totalorder %s30, 0
      %p279 = por %p277, %p278
      %p280 = scmp.ne.s32.totalorder %s266, %s267
      %p281 = scmp.eq.s32.totalorder %s31, 9
      %p282 = por %p280, %p281
      %p284 = scmp.ne.s32.totalorder %s267, %s283
      %p285 = scmp.eq.s32.totalorder %s31, 0
      %p286 = por %p284, %p285
      %p287 = scmp.le.s32.totalorder 1, %s25
      %p288 = scmp.lt.s32.totalorder %s25, 11
      %p289 = pnand %p287, %p288
      %p290 = pneg %p289
      // Predicated region
      $region9: #{tpu_custom_call.1} parent=5 // pred_check
        _
      $region10: #{tpu_custom_call.1} parent=5 // pred_check_branch
        %292 = sbr.rel (%p289) target = $region12
      $region11: #{tpu_custom_call.1} parent=5 // pred_region
        %s293 = ssub.s32 %s25, 1
        // Predicated region
        $region13: #{tpu_custom_call.1} parent=11 // pred_check
          %p294 = pneg %p86
        $region14: #{tpu_custom_call.1} parent=11 // pred_check_branch
          %296 = sbr.rel (%p294) target = $region16
        $region15: #{tpu_custom_call.1} parent=11 // pred_region
          _
        $region16: #{tpu_custom_call.1} parent=11 // pred_fallthru
          _
        // Predicated region
        $region17: #{tpu_custom_call.1} parent=11 // pred_check
          %p297 = pneg %p107
        $region18: #{tpu_custom_call.1} parent=11 // pred_check_branch
          %299 = sbr.rel (%p297) target = $region20
        $region19: #{tpu_custom_call.1} parent=11 // pred_region
          _
        $region20: #{tpu_custom_call.1} parent=11 // pred_fallthru
          _
        // Predicated region
        $region21: #{tpu_custom_call.1} parent=11 // pred_check
          %p300 = pneg %p128
        $region22: #{tpu_custom_call.1} parent=11 // pred_check_branch
          %302 = sbr.rel (%p300) target = $region24
        $region23: #{tpu_custom_call.1} parent=11 // pred_region
          _
        $region24: #{tpu_custom_call.1} parent=11 // pred_fallthru
          _
        // Predicated region
        $region25: #{tpu_custom_call.1} parent=11 // pred_check
          %p303 = pneg %p149
        $region26: #{tpu_custom_call.1} parent=11 // pred_check_branch
          %305 = sbr.rel (%p303) target = $region28
        $region27: #{tpu_custom_call.1} parent=11 // pred_region
          _
        $region28: #{tpu_custom_call.1} parent=11 // pred_fallthru
          _
      $region12: #{tpu_custom_call.1} parent=5 // pred_fallthru
        _
      %p306 = scmp.lt.s32.totalorder %s25, 10
      // Predicated region
      $region29: #{tpu_custom_call.1} parent=5 // pred_check
        %p307 = pneg %p306
      $region30: #{tpu_custom_call.1} parent=5 // pred_check_branch
        %309 = sbr.rel (%p307) target = $region32
      $region31: #{tpu_custom_call.1} parent=5 // pred_region
        // Predicated region
        $region33: #{tpu_custom_call.1} parent=31 // pred_check
          %p310 = pneg %p59
        $region34: #{tpu_custom_call.1} parent=31 // pred_check_branch
          %312 = sbr.rel (%p310) target = $region36
        $region35: #{tpu_custom_call.1} parent=31 // pred_region
          %s313 = sand.u32 %s49, 1
          %s314 = sand.u32 %s49, 1
          %s315 = smul.addr %s314, 64
          %s316 = scalar_lea.vmem [#allocation3], %s315
          %s317 = smul.u32 8, %s32
          %s318 = smul.addr %s317, 5
          %s319 = sadd.s32 %s33, %s318
          %s320 = smul.addr %s319, 8
          %s321 = scalar_lea.vmem %s0, %s320
          // Predicated region
          $region37: #{tpu_custom_call.1} parent=35 // pred_check
            _
          $region38: #{tpu_custom_call.1} parent=35 // pred_check_branch
            %323 = sbr.rel (0) target = $region40
          $region39: #{tpu_custom_call.1} parent=35 // pred_region
            // Predicated region
            $region41: #{tpu_custom_call.1} parent=39 // pred_check
              _
            $region42: #{tpu_custom_call.1} parent=39 // pred_check_branch
              %325 = sbr.rel (0) target = $region44
            $region43: #{tpu_custom_call.1} parent=39 // pred_region
              // Predicated region
              $region56: #{tpu_custom_call.1} parent=43 // pred_check
                _
              $region57: #{tpu_custom_call.1} parent=43 // pred_check_branch
                %355 = sbr.rel (0) target = $region59
              $region58: #{tpu_custom_call.1} parent=43 // pred_region
                loop: start=0, step=1, limit=1
                $region60: #{tpu_custom_call.1} parent=58 // loop_pre_header
                  _
                $region61: #{tpu_custom_call.1} parent=58 // loop_header
                  %s357 = sphi 0, %s361
                  %p358 = scmp.ge.s32.totalorder %s357, 1
                  %s362 = sphi %s321, %s321
                  %s363 = sphi %s316, %s316
                $region62: #{tpu_custom_call.1} parent=58 // loop_header_branch
                  %360 = sbr.rel (%p358) target = $region66
                $region63: #{tpu_custom_call.1} parent=58 // loop_body
                  %v364 = vld [vmem:[%s362] sm:$0xff]
                  %365 = vst [vmem:[%s363] sm:$0xff] %v364
                  %v366 = vld [vmem:[%s362 + $0x28] sm:$0xff]
                  %367 = vst [vmem:[%s363 + $0x8] sm:$0xff] %v366
                  %v368 = vld [vmem:[%s362 + $0x50] sm:$0xff]
                  %369 = vst [vmem:[%s363 + $0x10] sm:$0xff] %v368
                  %v370 = vld [vmem:[%s362 + $0x78] sm:$0xff]
                  %371 = vst [vmem:[%s363 + $0x18] sm:$0xff] %v370
                  %v372 = vld [vmem:[%s362 + $0xa0] sm:$0xff]
                  %373 = vst [vmem:[%s363 + $0x20] sm:$0xff] %v372
                  %v374 = vld [vmem:[%s362 + $0xc8] sm:$0xff]
                  %375 = vst [vmem:[%s363 + $0x28] sm:$0xff] %v374
                  %v376 = vld [vmem:[%s362 + $0xf0] sm:$0xff]
                  %377 = vst [vmem:[%s363 + $0x30] sm:$0xff] %v376
                  %v378 = vld [vmem:[%s362 + $0x118] sm:$0xff]
                  %379 = vst [vmem:[%s363 + $0x38] sm:$0xff] %v378
                $region64: #{tpu_custom_call.1} parent=58 // loop_footer
                  %s361 = sadd.s32 1, %s357
                $region65: #{tpu_custom_call.1} parent=58 // loop_footer_branch
                  %356 = sbr.rel target = $region61
                $region66: #{tpu_custom_call.1} parent=58 // loop_exit
                  _
              $region59: #{tpu_custom_call.1} parent=43 // pred_fallthru
                _
              // Predicated region
              $region67: #{tpu_custom_call.1} parent=43 // pred_check
                _
              $region68: #{tpu_custom_call.1} parent=43 // pred_check_branch
                %381 = sbr.rel target = $region70
              $region69: #{tpu_custom_call.1} parent=43 // pred_region
                _
              $region70: #{tpu_custom_call.1} parent=43 // pred_fallthru
                _
            $region44: #{tpu_custom_call.1} parent=39 // pred_fallthru
              _
            // Predicated region
            $region45: #{tpu_custom_call.1} parent=39 // pred_check
              _
            $region46: #{tpu_custom_call.1} parent=39 // pred_check_branch
              %327 = sbr.rel target = $region48
            $region47: #{tpu_custom_call.1} parent=39 // pred_region
              %s329 = ssub.s32 256, 1
              loop: start=0, step=1, limit=1
              $region49: #{tpu_custom_call.1} parent=47 // loop_pre_header
                _
              $region50: #{tpu_custom_call.1} parent=47 // loop_header
                %s331 = sphi 0, %s335
                %p332 = scmp.ge.s32.totalorder %s331, 1
                %s336 = sphi %s321, %s321
                %s337 = sphi %s316, %s316
              $region51: #{tpu_custom_call.1} parent=47 // loop_header_branch
                %334 = sbr.rel (%p332) target = $region55
              $region52: #{tpu_custom_call.1} parent=47 // loop_body
                %v338 = vld [vmem:[%s336] sm:%s329]
                %339 = vst [vmem:[%s337] sm:%s329] %v338
                %v340 = vld [vmem:[%s336 + $0x28] sm:%s329]
                %341 = vst [vmem:[%s337 + $0x8] sm:%s329] %v340
                %v342 = vld [vmem:[%s336 + $0x50] sm:%s329]
                %343 = vst [vmem:[%s337 + $0x10] sm:%s329] %v342
                %v344 = vld [vmem:[%s336 + $0x78] sm:%s329]
                %345 = vst [vmem:[%s337 + $0x18] sm:%s329] %v344
                %v346 = vld [vmem:[%s336 + $0xa0] sm:%s329]
                %347 = vst [vmem:[%s337 + $0x20] sm:%s329] %v346
                %v348 = vld [vmem:[%s336 + $0xc8] sm:%s329]
                %349 = vst [vmem:[%s337 + $0x28] sm:%s329] %v348
                %v350 = vld [vmem:[%s336 + $0xf0] sm:%s329]
                %351 = vst [vmem:[%s337 + $0x30] sm:%s329] %v350
                %v352 = vld [vmem:[%s336 + $0x118] sm:%s329]
                %353 = vst [vmem:[%s337 + $0x38] sm:%s329] %v352
              $region53: #{tpu_custom_call.1} parent=47 // loop_footer
                %s335 = sadd.s32 1, %s331
              $region54: #{tpu_custom_call.1} parent=47 // loop_footer_branch
                %330 = sbr.rel target = $region50
              $region55: #{tpu_custom_call.1} parent=47 // loop_exit
                _
            $region48: #{tpu_custom_call.1} parent=39 // pred_fallthru
              _
          $region40: #{tpu_custom_call.1} parent=35 // pred_fallthru
            _
          %382 = vnop
        $region36: #{tpu_custom_call.1} parent=31 // pred_fallthru
          _
        // Predicated region
        $region71: #{tpu_custom_call.1} parent=31 // pred_check
          %p383 = pneg %p169
        $region72: #{tpu_custom_call.1} parent=31 // pred_check_branch
          %385 = sbr.rel (%p383) target = $region74
        $region73: #{tpu_custom_call.1} parent=31 // pred_region
          %p386 = scmp.lt.s32.totalorder %s32, 1
          %s387 = scalar_select %p386, %s32, 1
          %s388 = smul.addr %s387, 8
          %s389 = scalar_lea.vmem %s5, %s388
        $region74: #{tpu_custom_call.1} parent=31 // pred_fallthru
          _
      $region32: #{tpu_custom_call.1} parent=5 // pred_fallthru
        _
      %p390 = scmp.le.s32.totalorder 1, %s25
      %p391 = scmp.lt.s32.totalorder %s25, 11
      %p392 = pnand %p390, %p391
      %p393 = pneg %p392
      // Predicated region
      $region75: #{tpu_custom_call.1} parent=5 // pred_check
        _
      $region76: #{tpu_custom_call.1} parent=5 // pred_check_branch
        %395 = sbr.rel (%p392) target = $region78
      $region77: #{tpu_custom_call.1} parent=5 // pred_region
        %s396 = ssub.s32 %s25, 1
        %s397 = sand.u32 %s52, 1
        %s398 = sand.u32 %s52, 1
        %s399 = smul.addr %s398, 64
        %s400 = scalar_lea.vmem [#allocation3], %s399
        // Predicated region
        $region79: #{tpu_custom_call.1} parent=77 // pred_check
          %p401 = pneg %p65
        $region80: #{tpu_custom_call.1} parent=77 // pred_check_branch
          %403 = sbr.rel (%p401) target = $region82
        $region81: #{tpu_custom_call.1} parent=77 // pred_region
          _
        $region82: #{tpu_custom_call.1} parent=77 // pred_fallthru
          _
        %s404 = sand.u32 %s52, 1
        %s405 = sand.u32 %s52, 1
        %s406 = smul.addr %s405, 64
        %s407 = scalar_lea.vmem [#allocation3], %s406
        %p408 = pneg %p65
        %p409 = pneg %p62
        %p410 = pneg %p86
        %p411 = pneg %p83
        %p412 = pneg %p107
        %p413 = pneg %p104
        %p414 = pneg %p128
        %p415 = pneg %p125
        %p416 = pneg %p149
        %p417 = pneg %p146
        %p418 = scmp.lt.s32.totalorder %s34, 1
        %s419 = scalar_select %p418, %s34, 1
        %s420 = smul.addr %s419, 8
        %s421 = scalar_lea.vmem %s5, %s420
        %p422 = pneg %p175
        %p423 = pneg %p172
        %p424 = pneg %p201
        %p425 = pneg %p198
        %s426 = sand.u32 %s188, 1
        %s427 = scalar_lea.sflag [#allocation5], %s426
        %s428 = sand.u32 %s188, 1
        %s429 = smul.addr %s428, 8
        %s430 = scalar_lea.vmem [#allocation4], %s429
        %p431 = pneg %p227
        %p432 = pneg %p224
        %s433 = sand.u32 %s30, 1
        %s434 = scalar_lea.sflag [#allocation7], %s433
        %s435 = sand.u32 %s214, 1
        %s436 = smul.addr %s435, 8
        %s437 = scalar_lea.vmem [#allocation6], %s436
        %p438 = pneg %p253
        %p439 = pneg %p250
        %s440 = sand.u32 %s30, 1
        %s441 = scalar_lea.sflag [#allocation7], %s440
        %s442 = sand.u32 %s240, 1
        %s443 = smul.addr %s442, 8
        %s444 = scalar_lea.vmem [#allocation8], %s443
        %p445 = pneg %p279
        %p446 = pneg %p276
        %s447 = sand.u32 %s266, 1
        %s448 = scalar_lea.sflag [#allocation10], %s447
        %s449 = sand.u32 %s266, 1
        %s450 = smul.addr %s449, 8
        %s451 = scalar_lea.vmem [#allocation9], %s450
        %s452 = smul.u32 8, %s34
        %p453 = scmp.lt.s32.totalorder %s34, 1
        %s454 = scalar_select %p453, %s34, 1
        %s455 = smul.addr %s454, 8
        %s456 = scalar_lea.vmem %s5, %s455
        %p457 = scmp.eq.s32.totalorder %s35, 0
        // Predicated region
        $region83: #{tpu_custom_call.1} parent=77 // pred_check
          %p458 = pneg %p457
        $region84: #{tpu_custom_call.1} parent=77 // pred_check_branch
          %460 = sbr.rel (%p458) target = $region86
        $region85: #{tpu_custom_call.1} parent=77 // pred_region
          %461 = vst [vmem:[#allocation2] sm:$0xff] 0.0
        $region86: #{tpu_custom_call.1} parent=77 // pred_fallthru
          _
        %v462 = vld [vmem:[%s400] sm:$0xff]
        %v463 = vld [vmem:[%s400 + $0x8] sm:$0xff]
        %v464 = vld [vmem:[%s400 + $0x10] sm:$0xff]
        %v465 = vld [vmem:[%s400 + $0x18] sm:$0xff]
        %v466 = vld [vmem:[%s400 + $0x20] sm:$0xff]
        %v467 = vld [vmem:[%s400 + $0x28] sm:$0xff]
        %v468 = vld [vmem:[%s400 + $0x30] sm:$0xff]
        %v469 = vld [vmem:[%s400 + $0x38] sm:$0xff]
        %s470 = smul.u32 %s35, 8
        %v471 = vlaneseq
        %v472 = vshrl.u32 %v471, 7
        %v473 = vstv %s470
        %v474 = vadd.s32 %v473, %v472
        %vm475 = vcmp.lt.s32.totalorder %v474, 36
        %v476 = vsel %vm475, %v462, 0.0
        %v477 = vsel %vm475, %v463, 0.0
        %v478 = vsel %vm475, %v464, 0.0
        %v479 = vsel %vm475, %v465, 0.0
        %v480 = vsel %vm475, %v466, 0.0
        %v481 = vsel %vm475, %v467, 0.0
        %v482 = vsel %vm475, %v468, 0.0
        %v483 = vsel %vm475, %v469, 0.0
        %v484 = vld [vmem:[#allocation2] sm:$0xff]
        %v485 = vrot.slane %v476, 4
        %v486 = vadd.f32 %v476, %v485
        %v487 = vrot.slane %v486, 2
        %v488 = vadd.f32 %v486, %v487
        %v489 = vrot.slane %v488, 1
        %v490 = vadd.f32 %v488, %v489
        %v491 = vrot.slane %v477, 4
        %v492 = vadd.f32 %v477, %v491
        %v493 = vrot.slane %v492, 2
        %v494 = vadd.f32 %v492, %v493
        %v495 = vrot.slane %v494, 1
        %v496 = vadd.f32 %v494, %v495
        %v497 = vrot.slane %v478, 4
        %v498 = vadd.f32 %v478, %v497
        %v499 = vrot.slane %v498, 2
        %v500 = vadd.f32 %v498, %v499
        %v501 = vrot.slane %v500, 1
        %v502 = vadd.f32 %v500, %v501
        %v503 = vrot.slane %v479, 4
        %v504 = vadd.f32 %v479, %v503
        %v505 = vrot.slane %v504, 2
        %v506 = vadd.f32 %v504, %v505
        %v507 = vrot.slane %v506, 1
        %v508 = vadd.f32 %v506, %v507
        %v509 = vrot.slane %v480, 4
        %v510 = vadd.f32 %v480, %v509
        %v511 = vrot.slane %v510, 2
        %v512 = vadd.f32 %v510, %v511
        %v513 = vrot.slane %v512, 1
        %v514 = vadd.f32 %v512, %v513
        %v515 = vrot.slane %v481, 4
        %v516 = vadd.f32 %v481, %v515
        %v517 = vrot.slane %v516, 2
        %v518 = vadd.f32 %v516, %v517
        %v519 = vrot.slane %v518, 1
        %v520 = vadd.f32 %v518, %v519
        %v521 = vrot.slane %v482, 4
        %v522 = vadd.f32 %v482, %v521
        %v523 = vrot.slane %v522, 2
        %v524 = vadd.f32 %v522, %v523
        %v525 = vrot.slane %v524, 1
        %v526 = vadd.f32 %v524, %v525
        %v527 = vrot.slane %v483, 4
        %v528 = vadd.f32 %v483, %v527
        %v529 = vrot.slane %v528, 2
        %v530 = vadd.f32 %v528, %v529
        %v531 = vrot.slane %v530, 1
        %v532 = vadd.f32 %v530, %v531
        %vm541 = vcmask 1041409
        %v542 = vsel %vm541, %v496, %v490
        %vm543 = vcmask 1042434
        %v544 = vsel %vm543, %v502, %v542
        %vm545 = vcmask 1043459
        %v546 = vsel %vm545, %v508, %v544
        %vm547 = vcmask 1044484
        %v548 = vsel %vm547, %v514, %v546
        %vm549 = vcmask 1045509
        %v550 = vsel %vm549, %v520, %v548
        %vm551 = vcmask 1046534
        %v552 = vsel %vm551, %v526, %v550
        %vm553 = vcmask 1047559
        %v554 = vsel %vm553, %v532, %v552
        %v556 = vadd.f32 %v484, %v554
        %557 = vst [vmem:[#allocation2] sm:$0xff] %v556
        %p558 = scmp.eq.s32.totalorder %s35, 4
        // Predicated region
        $region87: #{tpu_custom_call.1} parent=77 // pred_check
          %p559 = pneg %p558
        $region88: #{tpu_custom_call.1} parent=77 // pred_check_branch
          %561 = sbr.rel (%p559) target = $region90
        $region89: #{tpu_custom_call.1} parent=77 // pred_region
          %v562 = vld [vmem:[#allocation2] sm:$0xff]
          %v563 = vmul.f32 %v562, 0.027777778
          %564 = vst [vmem:[%s430] sm:$0xff] %v563
          %v565 = vld [vmem:[%s1] sm:$0xff]
          %v566 = vld [vmem:[%s1 + $0x8] sm:$0xff]
          %v567 = vld [vmem:[%s1 + $0x10] sm:$0xff]
          %v568 = vld [vmem:[%s1 + $0x18] sm:$0xff]
          %v569 = vld [vmem:[%s1 + $0x20] sm:$0xff]
          %v570 = vld [vmem:[%s1 + $0x28] sm:$0xff]
          %v571 = vld [vmem:[%s1 + $0x30] sm:$0xff]
          %v572 = vld [vmem:[%s1 + $0x38] sm:$0xff]
          %v573 = vld [vmem:[%s1 + $0x40] sm:$0xff]
          %v574 = vld [vmem:[%s1 + $0x48] sm:$0xff]
          %v575 = vld [vmem:[%s1 + $0x50] sm:$0xff]
          %v576 = vld [vmem:[%s1 + $0x58] sm:$0xff]
          %v577 = vld [vmem:[%s1 + $0x60] sm:$0xff]
          %v578 = vld [vmem:[%s1 + $0x68] sm:$0xff]
          %v579 = vld [vmem:[%s1 + $0x70] sm:$0xff]
          %v580 = vld [vmem:[%s1 + $0x78] sm:$0xff]
          %v581 = vld [vmem:[%s2] sm:$0x1]
          %v583 = vlaneseq
          %v584 = vshrl.u32 %v583, 7
          %v585 = vsub.s32 0, %v584
          %v586 = vrot.slane %v581, %v585
          %588 = vmatprep.subr.mxu0 0.0
          %589 = vmatpush1.msra.mxu0 %v580
          %590 = vmatprep.subr.mxu0 0.0
          %591 = vmatpush1.msra.mxu0 %v579
          %592 = vmatprep.subr.mxu0 0.0
          %593 = vmatpush1.msra.mxu0 %v578
          %594 = vmatprep.subr.mxu0 0.0
          %595 = vmatpush1.msra.mxu0 %v577
          %596 = vmatprep.subr.mxu0 0.0
          %597 = vmatpush1.msra.mxu0 %v576
          %598 = vmatprep.subr.mxu0 0.0
          %599 = vmatpush1.msra.mxu0 %v575
          %600 = vmatprep.subr.mxu0 0.0
          %601 = vmatpush1.msra.mxu0 %v574
          %602 = vmatprep.subr.mxu0 0.0
          %603 = vmatpush1.msra.mxu0 %v573
          %604 = vmatprep.subr.mxu0 0.0
          %605 = vmatpush1.msra.mxu0 %v572
          %606 = vmatprep.subr.mxu0 0.0
          %607 = vmatpush1.msra.mxu0 %v571
          %608 = vmatprep.subr.mxu0 0.0
          %609 = vmatpush1.msra.mxu0 %v570
          %610 = vmatprep.subr.mxu0 0.0
          %611 = vmatpush1.msra.mxu0 %v569
          %612 = vmatprep.subr.mxu0 0.0
          %613 = vmatpush1.msra.mxu0 %v568
          %614 = vmatprep.subr.mxu0 0.0
          %615 = vmatpush1.msra.mxu0 %v567
          %616 = vmatprep.subr.mxu0 0.0
          %617 = vmatpush1.msra.mxu0 %v566
          %618 = vmatprep.subr.mxu0 0.0
          %619 = vmatpush1.msra.mxu0 %v565
          %620 = vmatprep.subr.mxu0 0.0
          %621 = vmatpush2.msra.mxu0 0.0
          %622 = vmatprep.subr.mxu0 0.0
          %623 = vmatpush2.msra.mxu0 0.0
          %624 = vmatprep.subr.mxu0 0.0
          %625 = vmatpush2.msra.mxu0 0.0
          %626 = vmatprep.subr.mxu0 0.0
          %627 = vmatpush2.msra.mxu0 0.0
          %628 = vmatprep.subr.mxu0 0.0
          %629 = vmatpush2.msra.mxu0 0.0
          %630 = vmatprep.subr.mxu0 0.0
          %631 = vmatpush2.msra.mxu0 0.0
          %632 = vmatprep.subr.mxu0 0.0
          %633 = vmatpush2.msra.mxu0 0.0
          %634 = vmatprep.subr.mxu0 0.0
          %635 = vmatpush2.msra.mxu0 0.0
          %636 = vmatprep.subr.mxu0 0.0
          %637 = vmatpush2.msra.mxu0 0.0
          %638 = vmatprep.subr.mxu0 0.0
          %639 = vmatpush2.msra.mxu0 0.0
          %640 = vmatprep.subr.mxu0 0.0
          %641 = vmatpush2.msra.mxu0 0.0
          %642 = vmatprep.subr.mxu0 0.0
          %643 = vmatpush2.msra.mxu0 0.0
          %644 = vmatprep.subr.mxu0 0.0
          %645 = vmatpush2.msra.mxu0 0.0
          %646 = vmatprep.subr.mxu0 0.0
          %647 = vmatpush2.msra.mxu0 0.0
          %648 = vmatprep.subr.mxu0 0.0
          %649 = vmatpush2.msra.mxu0 0.0
          %650 = vmatprep.subr.mxu0 0.0
          %651 = vmatpush2.msra.mxu0 0.0
          %652 = vmatprep.mubr.f32.mxu0 0.0
          %653 = vmatmul.mubr.f32.gmra.mxu0 %v563
          %v654 = vpop.f32.mrf.mxu0
          %v655 = vadd.f32 %v586, %v654
          %v656 = vpop.f32.mrf.mxu0
          %657 = vdwg.mxu0
          %v658 = vmax.f32 %v655, 0.0
          %659 = vst [vmem:[%s437] sm:$0xff] %v658
          %v660 = vld [vmem:[%s3] sm:$0xff]
          %v661 = vld [vmem:[%s3 + $0x8] sm:$0xff]
          %v662 = vld [vmem:[%s3 + $0x10] sm:$0xff]
          %v663 = vld [vmem:[%s3 + $0x18] sm:$0xff]
          %v664 = vld [vmem:[%s3 + $0x20] sm:$0xff]
          %v665 = vld [vmem:[%s3 + $0x28] sm:$0xff]
          %v666 = vld [vmem:[%s3 + $0x30] sm:$0xff]
          %v667 = vld [vmem:[%s3 + $0x38] sm:$0xff]
          %v668 = vld [vmem:[%s3 + $0x40] sm:$0xff]
          %v669 = vld [vmem:[%s3 + $0x48] sm:$0xff]
          %v670 = vld [vmem:[%s3 + $0x50] sm:$0xff]
          %v671 = vld [vmem:[%s3 + $0x58] sm:$0xff]
          %v672 = vld [vmem:[%s3 + $0x60] sm:$0xff]
          %v673 = vld [vmem:[%s3 + $0x68] sm:$0xff]
          %v674 = vld [vmem:[%s3 + $0x70] sm:$0xff]
          %v675 = vld [vmem:[%s3 + $0x78] sm:$0xff]
          %v676 = vld [vmem:[%s4] sm:$0x1]
          %v678 = vlaneseq
          %v679 = vshrl.u32 %v678, 7
          %v680 = vsub.s32 0, %v679
          %v681 = vrot.slane %v676, %v680
          %683 = vmatprep.subr.mxu0 0.0
          %684 = vmatpush1.msra.mxu0 %v675
          %685 = vmatprep.subr.mxu0 0.0
          %686 = vmatpush1.msra.mxu0 %v674
          %687 = vmatprep.subr.mxu0 0.0
          %688 = vmatpush1.msra.mxu0 %v673
          %689 = vmatprep.subr.mxu0 0.0
          %690 = vmatpush1.msra.mxu0 %v672
          %691 = vmatprep.subr.mxu0 0.0
          %692 = vmatpush1.msra.mxu0 %v671
          %693 = vmatprep.subr.mxu0 0.0
          %694 = vmatpush1.msra.mxu0 %v670
          %695 = vmatprep.subr.mxu0 0.0
          %696 = vmatpush1.msra.mxu0 %v669
          %697 = vmatprep.subr.mxu0 0.0
          %698 = vmatpush1.msra.mxu0 %v668
          %699 = vmatprep.subr.mxu0 0.0
          %700 = vmatpush1.msra.mxu0 %v667
          %701 = vmatprep.subr.mxu0 0.0
          %702 = vmatpush1.msra.mxu0 %v666
          %703 = vmatprep.subr.mxu0 0.0
          %704 = vmatpush1.msra.mxu0 %v665
          %705 = vmatprep.subr.mxu0 0.0
          %706 = vmatpush1.msra.mxu0 %v664
          %707 = vmatprep.subr.mxu0 0.0
          %708 = vmatpush1.msra.mxu0 %v663
          %709 = vmatprep.subr.mxu0 0.0
          %710 = vmatpush1.msra.mxu0 %v662
          %711 = vmatprep.subr.mxu0 0.0
          %712 = vmatpush1.msra.mxu0 %v661
          %713 = vmatprep.subr.mxu0 0.0
          %714 = vmatpush1.msra.mxu0 %v660
          %715 = vmatprep.subr.mxu0 0.0
          %716 = vmatpush2.msra.mxu0 0.0
          %717 = vmatprep.subr.mxu0 0.0
          %718 = vmatpush2.msra.mxu0 0.0
          %719 = vmatprep.subr.mxu0 0.0
          %720 = vmatpush2.msra.mxu0 0.0
          %721 = vmatprep.subr.mxu0 0.0
          %722 = vmatpush2.msra.mxu0 0.0
          %723 = vmatprep.subr.mxu0 0.0
          %724 = vmatpush2.msra.mxu0 0.0
          %725 = vmatprep.subr.mxu0 0.0
          %726 = vmatpush2.msra.mxu0 0.0
          %727 = vmatprep.subr.mxu0 0.0
          %728 = vmatpush2.msra.mxu0 0.0
          %729 = vmatprep.subr.mxu0 0.0
          %730 = vmatpush2.msra.mxu0 0.0
          %731 = vmatprep.subr.mxu0 0.0
          %732 = vmatpush2.msra.mxu0 0.0
          %733 = vmatprep.subr.mxu0 0.0
          %734 = vmatpush2.msra.mxu0 0.0
          %735 = vmatprep.subr.mxu0 0.0
          %736 = vmatpush2.msra.mxu0 0.0
          %737 = vmatprep.subr.mxu0 0.0
          %738 = vmatpush2.msra.mxu0 0.0
          %739 = vmatprep.subr.mxu0 0.0
          %740 = vmatpush2.msra.mxu0 0.0
          %741 = vmatprep.subr.mxu0 0.0
          %742 = vmatpush2.msra.mxu0 0.0
          %743 = vmatprep.subr.mxu0 0.0
          %744 = vmatpush2.msra.mxu0 0.0
          %745 = vmatprep.subr.mxu0 0.0
          %746 = vmatpush2.msra.mxu0 0.0
          %747 = vmatprep.mubr.f32.mxu0 0.0
          %748 = vmatmul.mubr.f32.gmra.mxu0 %v658
          %v749 = vpop.f32.mrf.mxu0
          %v750 = vadd.f32 %v681, %v749
          %v751 = vpop.f32.mrf.mxu0
          %752 = vdwg.mxu0
          %753 = vst [vmem:[%s444] sm:$0xff] %v750
          %v754 = vlaneseq
          %v755 = vand.u32 %v754, 127
          %vm756 = vcmp.lt.s32.totalorder %v755, 8
          %v757 = vsel %vm756, %v750, -1e+30
          %758 = vmax.xlane.f32.xlu0 %v757
          %v759 = vpop.xlane.xlu0 %758
          %v760 = vsub.f32 %v757, %v759
          %v761 = vmul.f32 %v760, 1.442695
          %v762 = vpow.pop %v761
          %v763 = vsel %vm756, %v762, 0.0
          %764 = vadd.xlane.f32.xlu0 %v763
          %v765 = vpop.xlane.xlu0 %764
          %v766 = vlog2.pop %v765
          %v767 = vmul.f32 %v766, 0.6931472
          %v768 = vld [vmem:[%s456] sm:$0xff]
          %769 = vset.pattern.permute.xlu0 0
          %770 = vperm.xlu0 %769, %v768
          %v771 = vpop.permute.xlu0 %770
          %vm772 = vcmp.eq.s32.totalorder %v755, %v771
          %v773 = vsel %vm772, %v760, 0.0
          %774 = vadd.xlane.f32.xlu0 %v773
          %v775 = vpop.xlane.xlu0 %774
          %v776 = vsub.f32 %v767, %v775
          %777 = vst [vmem:[%s451] sm:$0xff] %v776
        $region90: #{tpu_custom_call.1} parent=77 // pred_fallthru
          _
        %s778 = sand.u32 %s188, 1
        %s779 = scalar_lea.sflag [#allocation5], %s778
        %s780 = sand.u32 %s188, 1
        %s781 = smul.addr %s780, 8
        %s782 = scalar_lea.vmem [#allocation4], %s781
        %s783 = sand.u32 %s30, 1
        %s784 = scalar_lea.sflag [#allocation7], %s783
        %s785 = sand.u32 %s214, 1
        %s786 = smul.addr %s785, 8
        %s787 = scalar_lea.vmem [#allocation6], %s786
        %s788 = sand.u32 %s30, 1
        %s789 = scalar_lea.sflag [#allocation7], %s788
        %s790 = sand.u32 %s240, 1
        %s791 = smul.addr %s790, 8
        %s792 = scalar_lea.vmem [#allocation8], %s791
        %s793 = sand.u32 %s266, 1
        %s794 = scalar_lea.sflag [#allocation10], %s793
        %s795 = sand.u32 %s266, 1
        %s796 = smul.addr %s795, 8
        %s797 = scalar_lea.vmem [#allocation9], %s796
        // Predicated region
        $region91: #{tpu_custom_call.1} parent=77 // pred_check
          %p798 = pneg %p198
        $region92: #{tpu_custom_call.1} parent=77 // pred_check_branch
          %800 = sbr.rel (%p798) target = $region94
        $region93: #{tpu_custom_call.1} parent=77 // pred_region
          %s802 = ssub.s32 128, 128
          %803 = vsyncadd %s779, %s802
          %s804 = smul.addr %s34, 128
          %s805 = scalar_lea.hbm %s6, %s804
          %s807 = sshll.u32 %s782, 4
          %s808 = int_to_ptr.vmem [resolvable:$true] %s807
          %810 = dma.vmem_to_hbm [thread:$0]  %s808, 128, %s805, %s779
        $region94: #{tpu_custom_call.1} parent=77 // pred_fallthru
          _
        // Predicated region
        $region95: #{tpu_custom_call.1} parent=77 // pred_check
          %p811 = pneg %p224
        $region96: #{tpu_custom_call.1} parent=77 // pred_check_branch
          %813 = sbr.rel (%p811) target = $region98
        $region97: #{tpu_custom_call.1} parent=77 // pred_region
          %s815 = ssub.s32 128, 128
          %816 = vsyncadd %s784, %s815
          %s817 = smul.addr %s34, 128
          %s818 = scalar_lea.hbm %s7, %s817
          %s820 = sshll.u32 %s787, 4
          %s821 = int_to_ptr.vmem [resolvable:$true] %s820
          %823 = dma.vmem_to_hbm [thread:$0]  %s821, 128, %s818, %s784
        $region98: #{tpu_custom_call.1} parent=77 // pred_fallthru
          _
        // Predicated region
        $region99: #{tpu_custom_call.1} parent=77 // pred_check
          %p824 = pneg %p250
        $region100: #{tpu_custom_call.1} parent=77 // pred_check_branch
          %826 = sbr.rel (%p824) target = $region102
        $region101: #{tpu_custom_call.1} parent=77 // pred_region
          %s828 = ssub.s32 128, 128
          %829 = vsyncadd %s789, %s828
          %s830 = smul.addr %s34, 128
          %s831 = scalar_lea.hbm %s8, %s830
          %s833 = sshll.u32 %s792, 4
          %s834 = int_to_ptr.vmem [resolvable:$true] %s833
          %836 = dma.vmem_to_hbm [thread:$0]  %s834, 128, %s831, %s789
        $region102: #{tpu_custom_call.1} parent=77 // pred_fallthru
          _
        // Predicated region
        $region103: #{tpu_custom_call.1} parent=77 // pred_check
          %p837 = pneg %p276
        $region104: #{tpu_custom_call.1} parent=77 // pred_check_branch
          %839 = sbr.rel (%p837) target = $region106
        $region105: #{tpu_custom_call.1} parent=77 // pred_region
          %s841 = ssub.s32 128, 128
          %842 = vsyncadd %s794, %s841
          %s843 = smul.addr %s34, 128
          %s844 = scalar_lea.hbm %s9, %s843
          %s846 = sshll.u32 %s797, 4
          %s847 = int_to_ptr.vmem [resolvable:$true] %s846
          %849 = dma.vmem_to_hbm [thread:$0]  %s847, 128, %s844, %s794
        $region106: #{tpu_custom_call.1} parent=77 // pred_fallthru
          _
      $region78: #{tpu_custom_call.1} parent=5 // pred_fallthru
        _
      %p850 = scmp.le.s32.totalorder 2, %s25
      // Predicated region
      $region107: #{tpu_custom_call.1} parent=5 // pred_check
        %p851 = pneg %p850
      $region108: #{tpu_custom_call.1} parent=5 // pred_check_branch
        %853 = sbr.rel (%p851) target = $region110
      $region109: #{tpu_custom_call.1} parent=5 // pred_region
        %s854 = ssub.s32 %s25, 2
        // Predicated region
        $region111: #{tpu_custom_call.1} parent=109 // pred_check
          %p855 = pneg %p204
        $region112: #{tpu_custom_call.1} parent=109 // pred_check_branch
          %857 = sbr.rel (%p855) target = $region114
        $region113: #{tpu_custom_call.1} parent=109 // pred_region
          %s858 = sand.u32 %s189, 1
          %s859 = scalar_lea.sflag [#allocation5], %s858
          %s860 = sand.u32 %s189, 1
          %s861 = smul.addr %s860, 8
          %s862 = scalar_lea.vmem [#allocation4], %s861
          %863 = dma.done %s859, 128
        $region114: #{tpu_custom_call.1} parent=109 // pred_fallthru
          _
        // Predicated region
        $region115: #{tpu_custom_call.1} parent=109 // pred_check
          %p864 = pneg %p230
        $region116: #{tpu_custom_call.1} parent=109 // pred_check_branch
          %866 = sbr.rel (%p864) target = $region118
        $region117: #{tpu_custom_call.1} parent=109 // pred_region
          %s867 = sand.u32 %s31, 1
          %s868 = scalar_lea.sflag [#allocation7], %s867
          %s869 = sand.u32 %s215, 1
          %s870 = smul.addr %s869, 8
          %s871 = scalar_lea.vmem [#allocation6], %s870
          %872 = dma.done %s868, 128
        $region118: #{tpu_custom_call.1} parent=109 // pred_fallthru
          _
        // Predicated region
        $region119: #{tpu_custom_call.1} parent=109 // pred_check
          %p873 = pneg %p256
        $region120: #{tpu_custom_call.1} parent=109 // pred_check_branch
          %875 = sbr.rel (%p873) target = $region122
        $region121: #{tpu_custom_call.1} parent=109 // pred_region
          %s876 = sand.u32 %s31, 1
          %s877 = scalar_lea.sflag [#allocation7], %s876
          %s878 = sand.u32 %s241, 1
          %s879 = smul.addr %s878, 8
          %s880 = scalar_lea.vmem [#allocation8], %s879
          %881 = dma.done %s877, 128
        $region122: #{tpu_custom_call.1} parent=109 // pred_fallthru
          _
        // Predicated region
        $region123: #{tpu_custom_call.1} parent=109 // pred_check
          %p882 = pneg %p282
        $region124: #{tpu_custom_call.1} parent=109 // pred_check_branch
          %884 = sbr.rel (%p882) target = $region126
        $region125: #{tpu_custom_call.1} parent=109 // pred_region
          %s885 = sand.u32 %s267, 1
          %s886 = scalar_lea.sflag [#allocation10], %s885
          %s887 = sand.u32 %s267, 1
          %s888 = smul.addr %s887, 8
          %s889 = scalar_lea.vmem [#allocation9], %s888
          %890 = dma.done %s886, 128
        $region126: #{tpu_custom_call.1} parent=109 // pred_fallthru
          _
      $region110: #{tpu_custom_call.1} parent=5 // pred_fallthru
        _
    $region6: #{tpu_custom_call.1} parent=1 // loop_footer
      %s29 = sadd.s32 1, %s25
    $region7: #{tpu_custom_call.1} parent=1 // loop_footer_branch
      %24 = sbr.rel target = $region3
    $region8: #{tpu_custom_call.1} parent=1 // loop_exit
      _
    %891 = vsyncpa [#allocation5], 1
    %s892 = scalar_lea.sflag [#allocation5], 1
    %893 = vsyncpa %s892, 1
    %894 = vsyncpa [#allocation7], 1
    %s895 = scalar_lea.sflag [#allocation7], 1
    %896 = vsyncpa %s895, 1
    %897 = vsyncpa [#allocation10], 1
    %s898 = scalar_lea.sflag [#allocation10], 1
    %899 = vsyncpa %s898, 1

// kernel: tpu_custom_call.1
$region0: #{tpu_custom_call.1}
  #allocation0 [shape = 'u32[]', space=smem, size = 0x4, offset = 0x4, fixed_abs, tag = 'smem constant byte address 0x4 - core index']
  #allocation1 [shape = 'u32[144,128]{1,0:T(1,128)}', space=vmem, size = 0x12000, scoped, tag = 'internal scratch']
  #allocation2 [shape = 'f32[8,128]{1,0:T(8,128)}', space=vmem, size = 0x1000, scoped, tag = 'scratch operand']
  %s0 = inlined_call_operand.vmem [shape: f32[16,36,128], index: 0, kind: input, shape index: {}]
  %s1 = inlined_call_operand.vmem [shape: f32[128,128], index: 1, kind: input, shape index: {}]
  %s2 = inlined_call_operand.vmem [shape: f32[1,128], index: 2, kind: input, shape index: {}]
  %s3 = inlined_call_operand.vmem [shape: f32[128,128], index: 3, kind: input, shape index: {}]
  %s4 = inlined_call_operand.vmem [shape: f32[1,128], index: 4, kind: input, shape index: {}]
  %s5 = inlined_call_operand.vmem [shape: s32[16,1], index: 5, kind: input, shape index: {}]
  %s6 = inlined_call_operand.hbm [shape: f32[16,128], index: 6, kind: output, shape index: {0}]
  %s7 = inlined_call_operand.hbm [shape: f32[16,128], index: 7, kind: output, shape index: {1}]
  %s8 = inlined_call_operand.hbm [shape: f32[16,128], index: 8, kind: output, shape index: {2}]
  %s9 = inlined_call_operand.hbm [shape: f32[16,128], index: 9, kind: output, shape index: {3}]
  %10 = xla_tuple %s6, %s7, %s8, %s9
  %s11 = sld [smem:[#allocation0]]
  $region127: #{tpu_custom_call.1} parent=0
    _
  %s13 = ssub.s32 1, %s11
  %s14 = scalar_select 0, %s13, %s11
  $region1: #{tpu_custom_call.1} parent=0
    #allocation3 [shape = 'u8[65536]{0}', space=vmem, size = 0x10000, scoped, tag = 'input window, operand 0']
    #allocation4 [shape = 'u8[8192]{0}', space=vmem, size = 0x2000, scoped, tag = 'output window, operand 0']
    #allocation5 [shape = 's32[2]{0}', space=sflag, size = 0x8, scoped, tag = 'scoped memory for tpu_custom_call.1']
    #allocation6 [shape = 'u8[8192]{0}', space=vmem, size = 0x2000, scoped, tag = 'output window, operand 1']
    #allocation7 [shape = 's32[2]{0}', space=sflag, size = 0x8, scoped, tag = 'scoped memory for tpu_custom_call.1']
    #allocation8 [shape = 'u8[8192]{0}', space=vmem, size = 0x2000, scoped, tag = 'output window, operand 2']
    #allocation9 [shape = 'u8[8192]{0}', space=vmem, size = 0x2000, scoped, tag = 'output window, operand 3']
    #allocation10 [shape = 's32[2]{0}', space=sflag, size = 0x8, scoped, tag = 'scoped memory for tpu_custom_call.1']
    %15 = vsyncpa [#allocation5], 0
    %s16 = scalar_lea.sflag [#allocation5], 1
    %17 = vsyncpa %s16, 0
    %18 = vsyncpa [#allocation7], 0
    %s19 = scalar_lea.sflag [#allocation7], 1
    %20 = vsyncpa %s19, 0
    %21 = vsyncpa [#allocation10], 0
    %s22 = scalar_lea.sflag [#allocation10], 1
    %23 = vsyncpa %s22, 0
    loop: start=0, step=1, limit=12
    $region2: #{tpu_custom_call.1} parent=1 // loop_pre_header
      _
    $region3: #{tpu_custom_call.1} parent=1 // loop_header
      %s25 = sphi 0, %s29
      %p26 = scmp.ge.s32.totalorder %s25, 12
      %s32 = sphi 0, %s44
      %s33 = sphi 0, %s40
      %s34 = sphi 0, %s32
      %s35 = sphi 0, %s33
      %s36 = sphi 0, %s34
      %s37 = sphi 0, %s35
      %s49 = sphi 0, %s51
      %s52 = sphi 0, %s49
      %s53 = sphi 0, %s52
      %s69 = sphi 0, %s53
      %s73 = sphi 0, %s73
      %s75 = sphi 0, %s73
      %s76 = sphi 0, %s75
      %s90 = sphi 0, %s76
      %s94 = sphi 0, %s94
      %s96 = sphi 0, %s94
      %s97 = sphi 0, %s96
      %s111 = sphi 0, %s97
      %s115 = sphi 0, %s115
      %s117 = sphi 0, %s115
      %s118 = sphi 0, %s117
      %s132 = sphi 0, %s118
      %s136 = sphi 0, %s136
      %s138 = sphi 0, %s136
      %s139 = sphi 0, %s138
      %s153 = sphi 0, %s139
      %s159 = sphi 0, %s161
      %s162 = sphi 0, %s159
      %s163 = sphi 0, %s162
      %s179 = sphi 0, %s163
      %s185 = sphi 0, %s187
      %s188 = sphi 0, %s185
      %s189 = sphi 0, %s188
      %s205 = sphi 0, %s189
      %s211 = sphi 0, %s213
      %s214 = sphi 0, %s211
      %s215 = sphi 0, %s214
      %s231 = sphi 0, %s215
      %s237 = sphi 0, %s239
      %s240 = sphi 0, %s237
      %s241 = sphi 0, %s240
      %s257 = sphi 0, %s241
      %s263 = sphi 0, %s265
      %s266 = sphi 0, %s263
      %s267 = sphi 0, %s266
      %s283 = sphi 0, %s267
    $region4: #{tpu_custom_call.1} parent=1 // loop_header_branch
      %28 = sbr.rel (%p26) target = $region8
    $region5: #{tpu_custom_call.1} parent=1 // loop_body
      %s30 = ssub.s32 %s25, 1
      %s31 = ssub.s32 %s25, 2
      %s38 = sadd.s32 1, %s33
      %p39 = scmp.ge.s32.totalorder %s38, 5
      %s40 = scalar_select %p39, 0, %s38
      %s41 = sadd.s32 1, %s32
      %s42 = scalar_select %p39, %s41, %s32
      %p43 = scmp.ge.s32.totalorder %s42, 2
      %s44 = scalar_select %p43, 0, %s42
      %s45 = ssub.s32 %s32, %s44
      %s46 = ssub.s32 %s33, %s40
      %s47 = sor.u32 %s45, %s46
      %p48 = scmp.eq.s32.totalorder %s47, 0
      %s50 = sadd.s32 %s49, 1
      %s51 = scalar_select %p48, %s49, %s50
      %p54 = pneg %p48
      %p55 = scmp.eq.s32.totalorder %s25, 9
      %p56 = por %p54, %p55
      %p57 = scmp.ne.s32.totalorder %s49, %s52
      %p58 = scmp.eq.s32.totalorder %s25, 0
      %p59 = por %p57, %p58
      %p60 = scmp.ne.s32.totalorder %s49, %s52
      %p61 = scmp.eq.s32.totalorder %s30, 9
      %p62 = por %p60, %p61
      %p63 = scmp.ne.s32.totalorder %s52, %s53
      %p64 = scmp.eq.s32.totalorder %s30, 0
      %p65 = por %p63, %p64
      %p66 = scmp.ne.s32.totalorder %s52, %s53
      %p67 = scmp.eq.s32.totalorder %s31, 9
      %p68 = por %p66, %p67
      %p70 = scmp.ne.s32.totalorder %s53, %s69
      %p71 = scmp.eq.s32.totalorder %s31, 0
      %p72 = por %p70, %p71
      %s74 = sadd.s32 %s73, 1
      %p77 = scmp.eq.s32.totalorder %s25, 9
      %p78 = scmp.ne.s32.totalorder %s73, %s75
      %p79 = scmp.eq.s32.totalorder %s25, 0
      %p80 = por %p78, %p79
      %p81 = scmp.ne.s32.totalorder %s73, %s75
      %p82 = scmp.eq.s32.totalorder %s30, 9
      %p83 = por %p81, %p82
      %p84 = scmp.ne.s32.totalorder %s75, %s76
      %p85 = scmp.eq.s32.totalorder %s30, 0
      %p86 = por %p84, %p85
      %p87 = scmp.ne.s32.totalorder %s75, %s76
      %p88 = scmp.eq.s32.totalorder %s31, 9
      %p89 = por %p87, %p88
      %p91 = scmp.ne.s32.totalorder %s76, %s90
      %p92 = scmp.eq.s32.totalorder %s31, 0
      %p93 = por %p91, %p92
      %s95 = sadd.s32 %s94, 1
      %p98 = scmp.eq.s32.totalorder %s25, 9
      %p99 = scmp.ne.s32.totalorder %s94, %s96
      %p100 = scmp.eq.s32.totalorder %s25, 0
      %p101 = por %p99, %p100
      %p102 = scmp.ne.s32.totalorder %s94, %s96
      %p103 = scmp.eq.s32.totalorder %s30, 9
      %p104 = por %p102, %p103
      %p105 = scmp.ne.s32.totalorder %s96, %s97
      %p106 = scmp.eq.s32.totalorder %s30, 0
      %p107 = por %p105, %p106
      %p108 = scmp.ne.s32.totalorder %s96, %s97
      %p109 = scmp.eq.s32.totalorder %s31, 9
      %p110 = por %p108, %p109
      %p112 = scmp.ne.s32.totalorder %s97, %s111
      %p113 = scmp.eq.s32.totalorder %s31, 0
      %p114 = por %p112, %p113
      %s116 = sadd.s32 %s115, 1
      %p119 = scmp.eq.s32.totalorder %s25, 9
      %p120 = scmp.ne.s32.totalorder %s115, %s117
      %p121 = scmp.eq.s32.totalorder %s25, 0
      %p122 = por %p120, %p121
      %p123 = scmp.ne.s32.totalorder %s115, %s117
      %p124 = scmp.eq.s32.totalorder %s30, 9
      %p125 = por %p123, %p124
      %p126 = scmp.ne.s32.totalorder %s117, %s118
      %p127 = scmp.eq.s32.totalorder %s30, 0
      %p128 = por %p126, %p127
      %p129 = scmp.ne.s32.totalorder %s117, %s118
      %p130 = scmp.eq.s32.totalorder %s31, 9
      %p131 = por %p129, %p130
      %p133 = scmp.ne.s32.totalorder %s118, %s132
      %p134 = scmp.eq.s32.totalorder %s31, 0
      %p135 = por %p133, %p134
      %s137 = sadd.s32 %s136, 1
      %p140 = scmp.eq.s32.totalorder %s25, 9
      %p141 = scmp.ne.s32.totalorder %s136, %s138
      %p142 = scmp.eq.s32.totalorder %s25, 0
      %p143 = por %p141, %p142
      %p144 = scmp.ne.s32.totalorder %s136, %s138
      %p145 = scmp.eq.s32.totalorder %s30, 9
      %p146 = por %p144, %p145
      %p147 = scmp.ne.s32.totalorder %s138, %s139
      %p148 = scmp.eq.s32.totalorder %s30, 0
      %p149 = por %p147, %p148
      %p150 = scmp.ne.s32.totalorder %s138, %s139
      %p151 = scmp.eq.s32.totalorder %s31, 9
      %p152 = por %p150, %p151
      %p154 = scmp.ne.s32.totalorder %s139, %s153
      %p155 = scmp.eq.s32.totalorder %s31, 0
      %p156 = por %p154, %p155
      %s157 = ssub.s32 %s32, %s44
      %p158 = scmp.eq.s32.totalorder %s157, 0
      %s160 = sadd.s32 %s159, 1
      %s161 = scalar_select %p158, %s159, %s160
      %p164 = pneg %p158
      %p165 = scmp.eq.s32.totalorder %s25, 9
      %p166 = por %p164, %p165
      %p167 = scmp.ne.s32.totalorder %s159, %s162
      %p168 = scmp.eq.s32.totalorder %s25, 0
      %p169 = por %p167, %p168
      %p170 = scmp.ne.s32.totalorder %s159, %s162
      %p171 = scmp.eq.s32.totalorder %s30, 9
      %p172 = por %p170, %p171
      %p173 = scmp.ne.s32.totalorder %s162, %s163
      %p174 = scmp.eq.s32.totalorder %s30, 0
      %p175 = por %p173, %p174
      %p176 = scmp.ne.s32.totalorder %s162, %s163
      %p177 = scmp.eq.s32.totalorder %s31, 9
      %p178 = por %p176, %p177
      %p180 = scmp.ne.s32.totalorder %s163, %s179
      %p181 = scmp.eq.s32.totalorder %s31, 0
      %p182 = por %p180, %p181
      %s183 = ssub.s32 %s32, %s44
      %p184 = scmp.eq.s32.totalorder %s183, 0
      %s186 = sadd.s32 %s185, 1
      %s187 = scalar_select %p184, %s185, %s186
      %p190 = pneg %p184
      %p191 = scmp.eq.s32.totalorder %s25, 9
      %p192 = por %p190, %p191
      %p193 = scmp.ne.s32.totalorder %s185, %s188
      %p194 = scmp.eq.s32.totalorder %s25, 0
      %p195 = por %p193, %p194
      %p196 = scmp.ne.s32.totalorder %s185, %s188
      %p197 = scmp.eq.s32.totalorder %s30, 9
      %p198 = por %p196, %p197
      %p199 = scmp.ne.s32.totalorder %s188, %s189
      %p200 = scmp.eq.s32.totalorder %s30, 0
      %p201 = por %p199, %p200
      %p202 = scmp.ne.s32.totalorder %s188, %s189
      %p203 = scmp.eq.s32.totalorder %s31, 9
      %p204 = por %p202, %p203
      %p206 = scmp.ne.s32.totalorder %s189, %s205
      %p207 = scmp.eq.s32.totalorder %s31, 0
      %p208 = por %p206, %p207
      %s209 = ssub.s32 %s32, %s44
      %p210 = scmp.eq.s32.totalorder %s209, 0
      %s212 = sadd.s32 %s211, 1
      %s213 = scalar_select %p210, %s211, %s212
      %p216 = pneg %p210
      %p217 = scmp.eq.s32.totalorder %s25, 9
      %p218 = por %p216, %p217
      %p219 = scmp.ne.s32.totalorder %s211, %s214
      %p220 = scmp.eq.s32.totalorder %s25, 0
      %p221 = por %p219, %p220
      %p222 = scmp.ne.s32.totalorder %s211, %s214
      %p223 = scmp.eq.s32.totalorder %s30, 9
      %p224 = por %p222, %p223
      %p225 = scmp.ne.s32.totalorder %s214, %s215
      %p226 = scmp.eq.s32.totalorder %s30, 0
      %p227 = por %p225, %p226
      %p228 = scmp.ne.s32.totalorder %s214, %s215
      %p229 = scmp.eq.s32.totalorder %s31, 9
      %p230 = por %p228, %p229
      %p232 = scmp.ne.s32.totalorder %s215, %s231
      %p233 = scmp.eq.s32.totalorder %s31, 0
      %p234 = por %p232, %p233
      %s235 = ssub.s32 %s32, %s44
      %p236 = scmp.eq.s32.totalorder %s235, 0
      %s238 = sadd.s32 %s237, 1
      %s239 = scalar_select %p236, %s237, %s238
      %p242 = pneg %p236
      %p243 = scmp.eq.s32.totalorder %s25, 9
      %p244 = por %p242, %p243
      %p245 = scmp.ne.s32.totalorder %s237, %s240
      %p246 = scmp.eq.s32.totalorder %s25, 0
      %p247 = por %p245, %p246
      %p248 = scmp.ne.s32.totalorder %s237, %s240
      %p249 = scmp.eq.s32.totalorder %s30, 9
      %p250 = por %p248, %p249
      %p251 = scmp.ne.s32.totalorder %s240, %s241
      %p252 = scmp.eq.s32.totalorder %s30, 0
      %p253 = por %p251, %p252
      %p254 = scmp.ne.s32.totalorder %s240, %s241
      %p255 = scmp.eq.s32.totalorder %s31, 9
      %p256 = por %p254, %p255
      %p258 = scmp.ne.s32.totalorder %s241, %s257
      %p259 = scmp.eq.s32.totalorder %s31, 0
      %p260 = por %p258, %p259
      %s261 = ssub.s32 %s32, %s44
      %p262 = scmp.eq.s32.totalorder %s261, 0
      %s264 = sadd.s32 %s263, 1
      %s265 = scalar_select %p262, %s263, %s264
      %p268 = pneg %p262
      %p269 = scmp.eq.s32.totalorder %s25, 9
      %p270 = por %p268, %p269
      %p271 = scmp.ne.s32.totalorder %s263, %s266
      %p272 = scmp.eq.s32.totalorder %s25, 0
      %p273 = por %p271, %p272
      %p274 = scmp.ne.s32.totalorder %s263, %s266
      %p275 = scmp.eq.s32.totalorder %s30, 9
      %p276 = por %p274, %p275
      %p277 = scmp.ne.s32.totalorder %s266, %s267
      %p278 = scmp.eq.s32.totalorder %s30, 0
      %p279 = por %p277, %p278
      %p280 = scmp.ne.s32.totalorder %s266, %s267
      %p281 = scmp.eq.s32.totalorder %s31, 9
      %p282 = por %p280, %p281
      %p284 = scmp.ne.s32.totalorder %s267, %s283
      %p285 = scmp.eq.s32.totalorder %s31, 0
      %p286 = por %p284, %p285
      %p287 = scmp.le.s32.totalorder 1, %s25
      %p288 = scmp.lt.s32.totalorder %s25, 11
      %p289 = pnand %p287, %p288
      %p290 = pneg %p289
      // Predicated region
      $region9: #{tpu_custom_call.1} parent=5 // pred_check
        _
      $region10: #{tpu_custom_call.1} parent=5 // pred_check_branch
        %292 = sbr.rel (%p289) target = $region12
      $region11: #{tpu_custom_call.1} parent=5 // pred_region
        %s293 = ssub.s32 %s25, 1
        // Predicated region
        $region13: #{tpu_custom_call.1} parent=11 // pred_check
          %p294 = pneg %p86
        $region14: #{tpu_custom_call.1} parent=11 // pred_check_branch
          %296 = sbr.rel (%p294) target = $region16
        $region15: #{tpu_custom_call.1} parent=11 // pred_region
          _
        $region16: #{tpu_custom_call.1} parent=11 // pred_fallthru
          _
        // Predicated region
        $region17: #{tpu_custom_call.1} parent=11 // pred_check
          %p297 = pneg %p107
        $region18: #{tpu_custom_call.1} parent=11 // pred_check_branch
          %299 = sbr.rel (%p297) target = $region20
        $region19: #{tpu_custom_call.1} parent=11 // pred_region
          _
        $region20: #{tpu_custom_call.1} parent=11 // pred_fallthru
          _
        // Predicated region
        $region21: #{tpu_custom_call.1} parent=11 // pred_check
          %p300 = pneg %p128
        $region22: #{tpu_custom_call.1} parent=11 // pred_check_branch
          %302 = sbr.rel (%p300) target = $region24
        $region23: #{tpu_custom_call.1} parent=11 // pred_region
          _
        $region24: #{tpu_custom_call.1} parent=11 // pred_fallthru
          _
        // Predicated region
        $region25: #{tpu_custom_call.1} parent=11 // pred_check
          %p303 = pneg %p149
        $region26: #{tpu_custom_call.1} parent=11 // pred_check_branch
          %305 = sbr.rel (%p303) target = $region28
        $region27: #{tpu_custom_call.1} parent=11 // pred_region
          _
        $region28: #{tpu_custom_call.1} parent=11 // pred_fallthru
          _
      $region12: #{tpu_custom_call.1} parent=5 // pred_fallthru
        _
      %p306 = scmp.lt.s32.totalorder %s25, 10
      // Predicated region
      $region29: #{tpu_custom_call.1} parent=5 // pred_check
        %p307 = pneg %p306
      $region30: #{tpu_custom_call.1} parent=5 // pred_check_branch
        %309 = sbr.rel (%p307) target = $region32
      $region31: #{tpu_custom_call.1} parent=5 // pred_region
        // Predicated region
        $region33: #{tpu_custom_call.1} parent=31 // pred_check
          %p310 = pneg %p59
        $region34: #{tpu_custom_call.1} parent=31 // pred_check_branch
          %312 = sbr.rel (%p310) target = $region36
        $region35: #{tpu_custom_call.1} parent=31 // pred_region
          %s313 = sand.u32 %s49, 1
          %s314 = sand.u32 %s49, 1
          %s315 = smul.addr %s314, 64
          %s316 = scalar_lea.vmem [#allocation3], %s315
          %s317 = smul.u32 8, %s32
          %s318 = smul.addr %s317, 5
          %s319 = sadd.s32 %s33, %s318
          %s320 = smul.addr %s319, 8
          %s321 = scalar_lea.vmem %s0, %s320
          // Predicated region
          $region37: #{tpu_custom_call.1} parent=35 // pred_check
            _
          $region38: #{tpu_custom_call.1} parent=35 // pred_check_branch
            %323 = sbr.rel (0) target = $region40
          $region39: #{tpu_custom_call.1} parent=35 // pred_region
            // Predicated region
            $region41: #{tpu_custom_call.1} parent=39 // pred_check
              _
            $region42: #{tpu_custom_call.1} parent=39 // pred_check_branch
              %325 = sbr.rel (0) target = $region44
            $region43: #{tpu_custom_call.1} parent=39 // pred_region
              // Predicated region
              $region56: #{tpu_custom_call.1} parent=43 // pred_check
                _
              $region57: #{tpu_custom_call.1} parent=43 // pred_check_branch
                %355 = sbr.rel (0) target = $region59
              $region58: #{tpu_custom_call.1} parent=43 // pred_region
                loop: start=0, step=1, limit=1
                $region60: #{tpu_custom_call.1} parent=58 // loop_pre_header
                  _
                $region61: #{tpu_custom_call.1} parent=58 // loop_header
                  %s357 = sphi 0, %s361
                  %p358 = scmp.ge.s32.totalorder %s357, 1
                  %s362 = sphi %s321, %s321
                  %s363 = sphi %s316, %s316
                $region62: #{tpu_custom_call.1} parent=58 // loop_header_branch
                  %360 = sbr.rel (%p358) target = $region66
                $region63: #{tpu_custom_call.1} parent=58 // loop_body
                  %v364 = vld [vmem:[%s362] sm:$0xff]
                  %365 = vst [vmem:[%s363] sm:$0xff] %v364
                  %v366 = vld [vmem:[%s362 + $0x28] sm:$0xff]
                  %367 = vst [vmem:[%s363 + $0x8] sm:$0xff] %v366
                  %v368 = vld [vmem:[%s362 + $0x50] sm:$0xff]
                  %369 = vst [vmem:[%s363 + $0x10] sm:$0xff] %v368
                  %v370 = vld [vmem:[%s362 + $0x78] sm:$0xff]
                  %371 = vst [vmem:[%s363 + $0x18] sm:$0xff] %v370
                  %v372 = vld [vmem:[%s362 + $0xa0] sm:$0xff]
                  %373 = vst [vmem:[%s363 + $0x20] sm:$0xff] %v372
                  %v374 = vld [vmem:[%s362 + $0xc8] sm:$0xff]
                  %375 = vst [vmem:[%s363 + $0x28] sm:$0xff] %v374
                  %v376 = vld [vmem:[%s362 + $0xf0] sm:$0xff]
                  %377 = vst [vmem:[%s363 + $0x30] sm:$0xff] %v376
                  %v378 = vld [vmem:[%s362 + $0x118] sm:$0xff]
                  %379 = vst [vmem:[%s363 + $0x38] sm:$0xff] %v378
                $region64: #{tpu_custom_call.1} parent=58 // loop_footer
                  %s361 = sadd.s32 1, %s357
                $region65: #{tpu_custom_call.1} parent=58 // loop_footer_branch
                  %356 = sbr.rel target = $region61
                $region66: #{tpu_custom_call.1} parent=58 // loop_exit
                  _
              $region59: #{tpu_custom_call.1} parent=43 // pred_fallthru
                _
              // Predicated region
              $region67: #{tpu_custom_call.1} parent=43 // pred_check
                _
              $region68: #{tpu_custom_call.1} parent=43 // pred_check_branch
                %381 = sbr.rel target = $region70
              $region69: #{tpu_custom_call.1} parent=43 // pred_region
                _
              $region70: #{tpu_custom_call.1} parent=43 // pred_fallthru
                _
            $region44: #{tpu_custom_call.1} parent=39 // pred_fallthru
              _
            // Predicated region
            $region45: #{tpu_custom_call.1} parent=39 // pred_check
              _
            $region46: #{tpu_custom_call.1} parent=39 // pred_check_branch
              %327 = sbr.rel target = $region48
            $region47: #{tpu_custom_call.1} parent=39 // pred_region
              %s329 = ssub.s32 256, 1
              loop: start=0, step=1, limit=1
              $region49: #{tpu_custom_call.1} parent=47 // loop_pre_header
                _
              $region50: #{tpu_custom_call.1} parent=47 // loop_header
                %s331 = sphi 0, %s335
                %p332 = scmp.ge.s32.totalorder %s331, 1
                %s336 = sphi %s321, %s321
                %s337 = sphi %s316, %s316
              $region51: #{tpu_custom_call.1} parent=47 // loop_header_branch
                %334 = sbr.rel (%p332) target = $region55
              $region52: #{tpu_custom_call.1} parent=47 // loop_body
                %v338 = vld [vmem:[%s336] sm:%s329]
                %339 = vst [vmem:[%s337] sm:%s329] %v338
                %v340 = vld [vmem:[%s336 + $0x28] sm:%s329]
                %341 = vst [vmem:[%s337 + $0x8] sm:%s329] %v340
                %v342 = vld [vmem:[%s336 + $0x50] sm:%s329]
                %343 = vst [vmem:[%s337 + $0x10] sm:%s329] %v342
                %v344 = vld [vmem:[%s336 + $0x78] sm:%s329]
                %345 = vst [vmem:[%s337 + $0x18] sm:%s329] %v344
                %v346 = vld [vmem:[%s336 + $0xa0] sm:%s329]
                %347 = vst [vmem:[%s337 + $0x20] sm:%s329] %v346
                %v348 = vld [vmem:[%s336 + $0xc8] sm:%s329]
                %349 = vst [vmem:[%s337 + $0x28] sm:%s329] %v348
                %v350 = vld [vmem:[%s336 + $0xf0] sm:%s329]
                %351 = vst [vmem:[%s337 + $0x30] sm:%s329] %v350
                %v352 = vld [vmem:[%s336 + $0x118] sm:%s329]
                %353 = vst [vmem:[%s337 + $0x38] sm:%s329] %v352
              $region53: #{tpu_custom_call.1} parent=47 // loop_footer
                %s335 = sadd.s32 1, %s331
              $region54: #{tpu_custom_call.1} parent=47 // loop_footer_branch
                %330 = sbr.rel target = $region50
              $region55: #{tpu_custom_call.1} parent=47 // loop_exit
                _
            $region48: #{tpu_custom_call.1} parent=39 // pred_fallthru
              _
          $region40: #{tpu_custom_call.1} parent=35 // pred_fallthru
            _
          %382 = vnop
        $region36: #{tpu_custom_call.1} parent=31 // pred_fallthru
          _
        // Predicated region
        $region71: #{tpu_custom_call.1} parent=31 // pred_check
          %p383 = pneg %p169
        $region72: #{tpu_custom_call.1} parent=31 // pred_check_branch
          %385 = sbr.rel (%p383) target = $region74
        $region73: #{tpu_custom_call.1} parent=31 // pred_region
          %p386 = scmp.lt.s32.totalorder %s32, 1
          %s387 = scalar_select %p386, %s32, 1
          %s388 = smul.addr %s387, 8
          %s389 = scalar_lea.vmem %s5, %s388
        $region74: #{tpu_custom_call.1} parent=31 // pred_fallthru
          _
      $region32: #{tpu_custom_call.1} parent=5 // pred_fallthru
        _
      %p390 = scmp.le.s32.totalorder 1, %s25
      %p391 = scmp.lt.s32.totalorder %s25, 11
      %p392 = pnand %p390, %p391
      %p393 = pneg %p392
      // Predicated region
      $region75: #{tpu_custom_call.1} parent=5 // pred_check
        _
      $region76: #{tpu_custom_call.1} parent=5 // pred_check_branch
        %395 = sbr.rel (%p392) target = $region78
      $region77: #{tpu_custom_call.1} parent=5 // pred_region
        %s396 = ssub.s32 %s25, 1
        %s397 = sand.u32 %s52, 1
        %s398 = sand.u32 %s52, 1
        %s399 = smul.addr %s398, 64
        %s400 = scalar_lea.vmem [#allocation3], %s399
        // Predicated region
        $region79: #{tpu_custom_call.1} parent=77 // pred_check
          %p401 = pneg %p65
        $region80: #{tpu_custom_call.1} parent=77 // pred_check_branch
          %403 = sbr.rel (%p401) target = $region82
        $region81: #{tpu_custom_call.1} parent=77 // pred_region
          _
        $region82: #{tpu_custom_call.1} parent=77 // pred_fallthru
          _
        %s404 = sand.u32 %s52, 1
        %s405 = sand.u32 %s52, 1
        %s406 = smul.addr %s405, 64
        %s407 = scalar_lea.vmem [#allocation3], %s406
        %p408 = pneg %p65
        %p409 = pneg %p62
        %p410 = pneg %p86
        %p411 = pneg %p83
        %p412 = pneg %p107
        %p413 = pneg %p104
        %p414 = pneg %p128
        %p415 = pneg %p125
        %p416 = pneg %p149
        %p417 = pneg %p146
        %p418 = scmp.lt.s32.totalorder %s34, 1
        %s419 = scalar_select %p418, %s34, 1
        %s420 = smul.addr %s419, 8
        %s421 = scalar_lea.vmem %s5, %s420
        %p422 = pneg %p175
        %p423 = pneg %p172
        %p424 = pneg %p201
        %p425 = pneg %p198
        %s426 = sand.u32 %s188, 1
        %s427 = scalar_lea.sflag [#allocation5], %s426
        %s428 = sand.u32 %s188, 1
        %s429 = smul.addr %s428, 8
        %s430 = scalar_lea.vmem [#allocation4], %s429
        %p431 = pneg %p227
        %p432 = pneg %p224
        %s433 = sand.u32 %s30, 1
        %s434 = scalar_lea.sflag [#allocation7], %s433
        %s435 = sand.u32 %s214, 1
        %s436 = smul.addr %s435, 8
        %s437 = scalar_lea.vmem [#allocation6], %s436
        %p438 = pneg %p253
        %p439 = pneg %p250
        %s440 = sand.u32 %s30, 1
        %s441 = scalar_lea.sflag [#allocation7], %s440
        %s442 = sand.u32 %s240, 1
        %s443 = smul.addr %s442, 8
        %s444 = scalar_lea.vmem [#allocation8], %s443
        %p445 = pneg %p279
        %p446 = pneg %p276
        %s447 = sand.u32 %s266, 1
        %s448 = scalar_lea.sflag [#allocation10], %s447
        %s449 = sand.u32 %s266, 1
        %s450 = smul.addr %s449, 8
        %s451 = scalar_lea.vmem [#allocation9], %s450
        %s452 = smul.u32 8, %s34
        %p453 = scmp.lt.s32.totalorder %s34, 1
        %s454 = scalar_select %p453, %s34, 1
        %s455 = smul.addr %s454, 8
        %s456 = scalar_lea.vmem %s5, %s455
        %p457 = scmp.eq.s32.totalorder %s35, 0
        // Predicated region
        $region83: #{tpu_custom_call.1} parent=77 // pred_check
          %p458 = pneg %p457
        $region84: #{tpu_custom_call.1} parent=77 // pred_check_branch
          %460 = sbr.rel (%p458) target = $region86
        $region85: #{tpu_custom_call.1} parent=77 // pred_region
          %461 = vst [vmem:[#allocation2] sm:$0xff] 0.0
        $region86: #{tpu_custom_call.1} parent=77 // pred_fallthru
          _
        %v462 = vld [vmem:[%s400] sm:$0xff]
        %v463 = vld [vmem:[%s400 + $0x8] sm:$0xff]
        %v464 = vld [vmem:[%s400 + $0x10] sm:$0xff]
        %v465 = vld [vmem:[%s400 + $0x18] sm:$0xff]
        %v466 = vld [vmem:[%s400 + $0x20] sm:$0xff]
        %v467 = vld [vmem:[%s400 + $0x28] sm:$0xff]
        %v468 = vld [vmem:[%s400 + $0x30] sm:$0xff]
        %v469 = vld [vmem:[%s400 + $0x38] sm:$0xff]
        %s470 = smul.u32 %s35, 8
        %v471 = vlaneseq
        %v472 = vshrl.u32 %v471, 7
        %v473 = vstv %s470
        %v474 = vadd.s32 %v473, %v472
        %vm475 = vcmp.lt.s32.totalorder %v474, 36
        %v476 = vsel %vm475, %v462, 0.0
        %v477 = vsel %vm475, %v463, 0.0
        %v478 = vsel %vm475, %v464, 0.0
        %v479 = vsel %vm475, %v465, 0.0
        %v480 = vsel %vm475, %v466, 0.0
        %v481 = vsel %vm475, %v467, 0.0
        %v482 = vsel %vm475, %v468, 0.0
        %v483 = vsel %vm475, %v469, 0.0
        %v484 = vld [vmem:[#allocation2] sm:$0xff]
        %v485 = vrot.slane %v476, 4
        %v486 = vadd.f32 %v476, %v485
        %v487 = vrot.slane %v486, 2
        %v488 = vadd.f32 %v486, %v487
        %v489 = vrot.slane %v488, 1
        %v490 = vadd.f32 %v488, %v489
        %v491 = vrot.slane %v477, 4
        %v492 = vadd.f32 %v477, %v491
        %v493 = vrot.slane %v492, 2
        %v494 = vadd.f32 %v492, %v493
        %v495 = vrot.slane %v494, 1
        %v496 = vadd.f32 %v494, %v495
        %v497 = vrot.slane %v478, 4
        %v498 = vadd.f32 %v478, %v497
        %v499 = vrot.slane %v498, 2
        %v500 = vadd.f32 %v498, %v499
        %v501 = vrot.slane %v500, 1
        %v502 = vadd.f32 %v500, %v501
        %v503 = vrot.slane %v479, 4
        %v504 = vadd.f32 %v479, %v503
        %v505 = vrot.slane %v504, 2
        %v506 = vadd.f32 %v504, %v505
        %v507 = vrot.slane %v506, 1
        %v508 = vadd.f32 %v506, %v507
        %v509 = vrot.slane %v480, 4
        %v510 = vadd.f32 %v480, %v509
        %v511 = vrot.slane %v510, 2
        %v512 = vadd.f32 %v510, %v511
        %v513 = vrot.slane %v512, 1
        %v514 = vadd.f32 %v512, %v513
        %v515 = vrot.slane %v481, 4
        %v516 = vadd.f32 %v481, %v515
        %v517 = vrot.slane %v516, 2
        %v518 = vadd.f32 %v516, %v517
        %v519 = vrot.slane %v518, 1
        %v520 = vadd.f32 %v518, %v519
        %v521 = vrot.slane %v482, 4
        %v522 = vadd.f32 %v482, %v521
        %v523 = vrot.slane %v522, 2
        %v524 = vadd.f32 %v522, %v523
        %v525 = vrot.slane %v524, 1
        %v526 = vadd.f32 %v524, %v525
        %v527 = vrot.slane %v483, 4
        %v528 = vadd.f32 %v483, %v527
        %v529 = vrot.slane %v528, 2
        %v530 = vadd.f32 %v528, %v529
        %v531 = vrot.slane %v530, 1
        %v532 = vadd.f32 %v530, %v531
        %vm541 = vcmask 1041409
        %v542 = vsel %vm541, %v496, %v490
        %vm543 = vcmask 1042434
        %v544 = vsel %vm543, %v502, %v542
        %vm545 = vcmask 1043459
        %v546 = vsel %vm545, %v508, %v544
        %vm547 = vcmask 1044484
        %v548 = vsel %vm547, %v514, %v546
        %vm549 = vcmask 1045509
        %v550 = vsel %vm549, %v520, %v548
        %vm551 = vcmask 1046534
        %v552 = vsel %vm551, %v526, %v550
        %vm553 = vcmask 1047559
        %v554 = vsel %vm553, %v532, %v552
        %v556 = vadd.f32 %v484, %v554
        %557 = vst [vmem:[#allocation2] sm:$0xff] %v556
        %p558 = scmp.eq.s32.totalorder %s35, 4
        // Predicated region
        $region87: #{tpu_custom_call.1} parent=77 // pred_check
          %p559 = pneg %p558
        $region88: #{tpu_custom_call.1} parent=77 // pred_check_branch
          %561 = sbr.rel (%p559) target = $region90
        $region89: #{tpu_custom_call.1} parent=77 // pred_region
          %v562 = vld [vmem:[#allocation2] sm:$0xff]
          %v563 = vmul.f32 %v562, 0.027777778
          %564 = vst [vmem:[%s430] sm:$0xff] %v563
          %v565 = vld [vmem:[%s1] sm:$0xff]
          %v566 = vld [vmem:[%s1 + $0x8] sm:$0xff]
          %v567 = vld [vmem:[%s1 + $0x10] sm:$0xff]
          %v568 = vld [vmem:[%s1 + $0x18] sm:$0xff]
          %v569 = vld [vmem:[%s1 + $0x20] sm:$0xff]
          %v570 = vld [vmem:[%s1 + $0x28] sm:$0xff]
          %v571 = vld [vmem:[%s1 + $0x30] sm:$0xff]
          %v572 = vld [vmem:[%s1 + $0x38] sm:$0xff]
          %v573 = vld [vmem:[%s1 + $0x40] sm:$0xff]
          %v574 = vld [vmem:[%s1 + $0x48] sm:$0xff]
          %v575 = vld [vmem:[%s1 + $0x50] sm:$0xff]
          %v576 = vld [vmem:[%s1 + $0x58] sm:$0xff]
          %v577 = vld [vmem:[%s1 + $0x60] sm:$0xff]
          %v578 = vld [vmem:[%s1 + $0x68] sm:$0xff]
          %v579 = vld [vmem:[%s1 + $0x70] sm:$0xff]
          %v580 = vld [vmem:[%s1 + $0x78] sm:$0xff]
          %v581 = vld [vmem:[%s2] sm:$0x1]
          %v583 = vlaneseq
          %v584 = vshrl.u32 %v583, 7
          %v585 = vsub.s32 0, %v584
          %v586 = vrot.slane %v581, %v585
          %588 = vmatprep.subr.mxu0 0.0
          %589 = vmatpush1.msra.mxu0 %v580
          %590 = vmatprep.subr.mxu0 0.0
          %591 = vmatpush1.msra.mxu0 %v579
          %592 = vmatprep.subr.mxu0 0.0
          %593 = vmatpush1.msra.mxu0 %v578
          %594 = vmatprep.subr.mxu0 0.0
          %595 = vmatpush1.msra.mxu0 %v577
          %596 = vmatprep.subr.mxu0 0.0
          %597 = vmatpush1.msra.mxu0 %v576
          %598 = vmatprep.subr.mxu0 0.0
          %599 = vmatpush1.msra.mxu0 %v575
          %600 = vmatprep.subr.mxu0 0.0
          %601 = vmatpush1.msra.mxu0 %v574
          %602 = vmatprep.subr.mxu0 0.0
          %603 = vmatpush1.msra.mxu0 %v573
          %604 = vmatprep.subr.mxu0 0.0
          %605 = vmatpush1.msra.mxu0 %v572
          %606 = vmatprep.subr.mxu0 0.0
          %607 = vmatpush1.msra.mxu0 %v571
          %608 = vmatprep.subr.mxu0 0.0
          %609 = vmatpush1.msra.mxu0 %v570
          %610 = vmatprep.subr.mxu0 0.0
          %611 = vmatpush1.msra.mxu0 %v569
          %612 = vmatprep.subr.mxu0 0.0
          %613 = vmatpush1.msra.mxu0 %v568
          %614 = vmatprep.subr.mxu0 0.0
          %615 = vmatpush1.msra.mxu0 %v567
          %616 = vmatprep.subr.mxu0 0.0
          %617 = vmatpush1.msra.mxu0 %v566
          %618 = vmatprep.subr.mxu0 0.0
          %619 = vmatpush1.msra.mxu0 %v565
          %620 = vmatprep.subr.mxu0 0.0
          %621 = vmatpush2.msra.mxu0 0.0
          %622 = vmatprep.subr.mxu0 0.0
          %623 = vmatpush2.msra.mxu0 0.0
          %624 = vmatprep.subr.mxu0 0.0
          %625 = vmatpush2.msra.mxu0 0.0
          %626 = vmatprep.subr.mxu0 0.0
          %627 = vmatpush2.msra.mxu0 0.0
          %628 = vmatprep.subr.mxu0 0.0
          %629 = vmatpush2.msra.mxu0 0.0
          %630 = vmatprep.subr.mxu0 0.0
          %631 = vmatpush2.msra.mxu0 0.0
          %632 = vmatprep.subr.mxu0 0.0
          %633 = vmatpush2.msra.mxu0 0.0
          %634 = vmatprep.subr.mxu0 0.0
          %635 = vmatpush2.msra.mxu0 0.0
          %636 = vmatprep.subr.mxu0 0.0
          %637 = vmatpush2.msra.mxu0 0.0
          %638 = vmatprep.subr.mxu0 0.0
          %639 = vmatpush2.msra.mxu0 0.0
          %640 = vmatprep.subr.mxu0 0.0
          %641 = vmatpush2.msra.mxu0 0.0
          %642 = vmatprep.subr.mxu0 0.0
          %643 = vmatpush2.msra.mxu0 0.0
          %644 = vmatprep.subr.mxu0 0.0
          %645 = vmatpush2.msra.mxu0 0.0
          %646 = vmatprep.subr.mxu0 0.0
          %647 = vmatpush2.msra.mxu0 0.0
          %648 = vmatprep.subr.mxu0 0.0
          %649 = vmatpush2.msra.mxu0 0.0
          %650 = vmatprep.subr.mxu0 0.0
          %651 = vmatpush2.msra.mxu0 0.0
          %652 = vmatprep.mubr.f32.mxu0 0.0
          %653 = vmatmul.mubr.f32.gmra.mxu0 %v563
          %v654 = vpop.f32.mrf.mxu0
          %v655 = vadd.f32 %v586, %v654
          %v656 = vpop.f32.mrf.mxu0
          %657 = vdwg.mxu0
          %v658 = vmax.f32 %v655, 0.0
          %659 = vst [vmem:[%s437] sm:$0xff] %v658
          %v660 = vld [vmem:[%s3] sm:$0xff]
          %v661 = vld [vmem:[%s3 + $0x8] sm:$0xff]
          %v662 = vld [vmem:[%s3 + $0x10] sm:$0xff]
          %v663 = vld [vmem:[%s3 + $0x18] sm:$0xff]
          %v664 = vld [vmem:[%s3 + $0x20] sm:$0xff]
          %v665 = vld [vmem:[%s3 + $0x28] sm:$0xff]
          %v666 = vld [vmem:[%s3 + $0x30] sm:$0xff]
          %v667 = vld [vmem:[%s3 + $0x38] sm:$0xff]
          %v668 = vld [vmem:[%s3 + $0x40] sm:$0xff]
          %v669 = vld [vmem:[%s3 + $0x48] sm:$0xff]
          %v670 = vld [vmem:[%s3 + $0x50] sm:$0xff]
          %v671 = vld [vmem:[%s3 + $0x58] sm:$0xff]
          %v672 = vld [vmem:[%s3 + $0x60] sm:$0xff]
          %v673 = vld [vmem:[%s3 + $0x68] sm:$0xff]
          %v674 = vld [vmem:[%s3 + $0x70] sm:$0xff]
          %v675 = vld [vmem:[%s3 + $0x78] sm:$0xff]
          %v676 = vld [vmem:[%s4] sm:$0x1]
          %v678 = vlaneseq
          %v679 = vshrl.u32 %v678, 7
          %v680 = vsub.s32 0, %v679
          %v681 = vrot.slane %v676, %v680
          %683 = vmatprep.subr.mxu0 0.0
          %684 = vmatpush1.msra.mxu0 %v675
          %685 = vmatprep.subr.mxu0 0.0
          %686 = vmatpush1.msra.mxu0 %v674
          %687 = vmatprep.subr.mxu0 0.0
          %688 = vmatpush1.msra.mxu0 %v673
          %689 = vmatprep.subr.mxu0 0.0
          %690 = vmatpush1.msra.mxu0 %v672
          %691 = vmatprep.subr.mxu0 0.0
          %692 = vmatpush1.msra.mxu0 %v671
          %693 = vmatprep.subr.mxu0 0.0
          %694 = vmatpush1.msra.mxu0 %v670
          %695 = vmatprep.subr.mxu0 0.0
          %696 = vmatpush1.msra.mxu0 %v669
          %697 = vmatprep.subr.mxu0 0.0
          %698 = vmatpush1.msra.mxu0 %v668
          %699 = vmatprep.subr.mxu0 0.0
          %700 = vmatpush1.msra.mxu0 %v667
          %701 = vmatprep.subr.mxu0 0.0
          %702 = vmatpush1.msra.mxu0 %v666
          %703 = vmatprep.subr.mxu0 0.0
          %704 = vmatpush1.msra.mxu0 %v665
          %705 = vmatprep.subr.mxu0 0.0
          %706 = vmatpush1.msra.mxu0 %v664
          %707 = vmatprep.subr.mxu0 0.0
          %708 = vmatpush1.msra.mxu0 %v663
          %709 = vmatprep.subr.mxu0 0.0
          %710 = vmatpush1.msra.mxu0 %v662
          %711 = vmatprep.subr.mxu0 0.0
          %712 = vmatpush1.msra.mxu0 %v661
          %713 = vmatprep.subr.mxu0 0.0
          %714 = vmatpush1.msra.mxu0 %v660
          %715 = vmatprep.subr.mxu0 0.0
          %716 = vmatpush2.msra.mxu0 0.0
          %717 = vmatprep.subr.mxu0 0.0
          %718 = vmatpush2.msra.mxu0 0.0
          %719 = vmatprep.subr.mxu0 0.0
          %720 = vmatpush2.msra.mxu0 0.0
          %721 = vmatprep.subr.mxu0 0.0
          %722 = vmatpush2.msra.mxu0 0.0
          %723 = vmatprep.subr.mxu0 0.0
          %724 = vmatpush2.msra.mxu0 0.0
          %725 = vmatprep.subr.mxu0 0.0
          %726 = vmatpush2.msra.mxu0 0.0
          %727 = vmatprep.subr.mxu0 0.0
          %728 = vmatpush2.msra.mxu0 0.0
          %729 = vmatprep.subr.mxu0 0.0
          %730 = vmatpush2.msra.mxu0 0.0
          %731 = vmatprep.subr.mxu0 0.0
          %732 = vmatpush2.msra.mxu0 0.0
          %733 = vmatprep.subr.mxu0 0.0
          %734 = vmatpush2.msra.mxu0 0.0
          %735 = vmatprep.subr.mxu0 0.0
          %736 = vmatpush2.msra.mxu0 0.0
          %737 = vmatprep.subr.mxu0 0.0
          %738 = vmatpush2.msra.mxu0 0.0
          %739 = vmatprep.subr.mxu0 0.0
          %740 = vmatpush2.msra.mxu0 0.0
          %741 = vmatprep.subr.mxu0 0.0
          %742 = vmatpush2.msra.mxu0 0.0
          %743 = vmatprep.subr.mxu0 0.0
          %744 = vmatpush2.msra.mxu0 0.0
          %745 = vmatprep.subr.mxu0 0.0
          %746 = vmatpush2.msra.mxu0 0.0
          %747 = vmatprep.mubr.f32.mxu0 0.0
          %748 = vmatmul.mubr.f32.gmra.mxu0 %v658
          %v749 = vpop.f32.mrf.mxu0
          %v750 = vadd.f32 %v681, %v749
          %v751 = vpop.f32.mrf.mxu0
          %752 = vdwg.mxu0
          %753 = vst [vmem:[%s444] sm:$0xff] %v750
          %v754 = vlaneseq
          %v755 = vand.u32 %v754, 127
          %vm756 = vcmp.lt.s32.totalorder %v755, 8
          %v757 = vsel %vm756, %v750, -1e+30
          %758 = vmax.xlane.f32.xlu0 %v757
          %v759 = vpop.xlane.xlu0 %758
          %v760 = vsub.f32 %v757, %v759
          %v761 = vmul.f32 %v760, 1.442695
          %v762 = vpow.pop %v761
          %v763 = vsel %vm756, %v762, 0.0
          %764 = vadd.xlane.f32.xlu0 %v763
          %v765 = vpop.xlane.xlu0 %764
          %v766 = vlog2.pop %v765
          %v767 = vmul.f32 %v766, 0.6931472
          %v768 = vld [vmem:[%s456] sm:$0xff]
          %769 = vset.pattern.permute.xlu0 0
          %770 = vperm.xlu0 %769, %v768
          %v771 = vpop.permute.xlu0 %770
          %vm772 = vcmp.eq.s32.totalorder %v755, %v771
          %v773 = vsel %vm772, %v760, 0.0
          %774 = vadd.xlane.f32.xlu0 %v773
          %v775 = vpop.xlane.xlu0 %774
          %v776 = vsub.f32 %v767, %v775
          %777 = vst [vmem:[%s451] sm:$0xff] %v776
        $region90: #{tpu_custom_call.1} parent=77 // pred_fallthru
          _
        %s778 = sand.u32 %s188, 1
        %s779 = scalar_lea.sflag [#allocation5], %s778
        %s780 = sand.u32 %s188, 1
        %s781 = smul.addr %s780, 8
        %s782 = scalar_lea.vmem [#allocation4], %s781
        %s783 = sand.u32 %s30, 1
        %s784 = scalar_lea.sflag [#allocation7], %s783
        %s785 = sand.u32 %s214, 1
        %s786 = smul.addr %s785, 8
        %s787 = scalar_lea.vmem [#allocation6], %s786
        %s788 = sand.u32 %s30, 1
        %s789 = scalar_lea.sflag [#allocation7], %s788
        %s790 = sand.u32 %s240, 1
        %s791 = smul.addr %s790, 8
        %s792 = scalar_lea.vmem [#allocation8], %s791
        %s793 = sand.u32 %s266, 1
        %s794 = scalar_lea.sflag [#allocation10], %s793
        %s795 = sand.u32 %s266, 1
        %s796 = smul.addr %s795, 8
        %s797 = scalar_lea.vmem [#allocation9], %s796
        // Predicated region
        $region91: #{tpu_custom_call.1} parent=77 // pred_check
          %p798 = pneg %p198
        $region92: #{tpu_custom_call.1} parent=77 // pred_check_branch
          %800 = sbr.rel (%p798) target = $region94
        $region93: #{tpu_custom_call.1} parent=77 // pred_region
          %s802 = ssub.s32 128, 128
          %803 = vsyncadd %s779, %s802
          %s804 = smul.addr %s34, 128
          %s805 = scalar_lea.hbm %s6, %s804
          %s807 = sshll.u32 %s782, 4
          %s808 = int_to_ptr.vmem [resolvable:$true] %s807
          %810 = dma.vmem_to_hbm [thread:$0]  %s808, 128, %s805, %s779
        $region94: #{tpu_custom_call.1} parent=77 // pred_fallthru
          _
        // Predicated region
        $region95: #{tpu_custom_call.1} parent=77 // pred_check
          %p811 = pneg %p224
        $region96: #{tpu_custom_call.1} parent=77 // pred_check_branch
          %813 = sbr.rel (%p811) target = $region98
        $region97: #{tpu_custom_call.1} parent=77 // pred_region
          %s815 = ssub.s32 128, 128
          %816 = vsyncadd %s784, %s815
          %s817 = smul.addr %s34, 128
          %s818 = scalar_lea.hbm %s7, %s817
          %s820 = sshll.u32 %s787, 4
          %s821 = int_to_ptr.vmem [resolvable:$true] %s820
          %823 = dma.vmem_to_hbm [thread:$0]  %s821, 128, %s818, %s784
        $region98: #{tpu_custom_call.1} parent=77 // pred_fallthru
          _
        // Predicated region
        $region99: #{tpu_custom_call.1} parent=77 // pred_check
          %p824 = pneg %p250
        $region100: #{tpu_custom_call.1} parent=77 // pred_check_branch
          %826 = sbr.rel (%p824) target = $region102
        $region101: #{tpu_custom_call.1} parent=77 // pred_region
          %s828 = ssub.s32 128, 128
          %829 = vsyncadd %s789, %s828
          %s830 = smul.addr %s34, 128
          %s831 = scalar_lea.hbm %s8, %s830
          %s833 = sshll.u32 %s792, 4
          %s834 = int_to_ptr.vmem [resolvable:$true] %s833
          %836 = dma.vmem_to_hbm [thread:$0]  %s834, 128, %s831, %s789
        $region102: #{tpu_custom_call.1} parent=77 // pred_fallthru
          _
        // Predicated region
        $region103: #{tpu_custom_call.1} parent=77 // pred_check
          %p837 = pneg %p276
        $region104: #{tpu_custom_call.1} parent=77 // pred_check_branch
          %839 = sbr.rel (%p837) target = $region106
        $region105: #{tpu_custom_call.1} parent=77 // pred_region
          %s841 = ssub.s32 128, 128
          %842 = vsyncadd %s794, %s841
          %s843 = smul.addr %s34, 128
          %s844 = scalar_lea.hbm %s9, %s843
          %s846 = sshll.u32 %s797, 4
          %s847 = int_to_ptr.vmem [resolvable:$true] %s846
          %849 = dma.vmem_to_hbm [thread:$0]  %s847, 128, %s844, %s794
        $region106: #{tpu_custom_call.1} parent=77 // pred_fallthru
          _
      $region78: #{tpu_custom_call.1} parent=5 // pred_fallthru
        _
      %p850 = scmp.le.s32.totalorder 2, %s25
      // Predicated region
      $region107: #{tpu_custom_call.1} parent=5 // pred_check
        %p851 = pneg %p850
      $region108: #{tpu_custom_call.1} parent=5 // pred_check_branch
        %853 = sbr.rel (%p851) target = $region110
      $region109: #{tpu_custom_call.1} parent=5 // pred_region
        %s854 = ssub.s32 %s25, 2
        // Predicated region
        $region111: #{tpu_custom_call.1} parent=109 // pred_check
          %p855 = pneg %p204
        $region112: #{tpu_custom_call.1} parent=109 // pred_check_branch
          %857 = sbr.rel (%p855) target = $region114
        $region113: #{tpu_custom_call.1} parent=109 // pred_region
          %s858 = sand.u32 %s189, 1
          %s859 = scalar_lea.sflag [#allocation5], %s858
          %s860 = sand.u32 %s189, 1
          %s861 = smul.addr %s860, 8
          %s862 = scalar_lea.vmem [#allocation4], %s861
          %863 = dma.done %s859, 128
        $region114: #{tpu_custom_call.1} parent=109 // pred_fallthru
          _
        // Predicated region
        $region115: #{tpu_custom_call.1} parent=109 // pred_check
          %p864 = pneg %p230
        $region116: #{tpu_custom_call.1} parent=109 // pred_check_branch
          %866 = sbr.rel (%p864) target = $region118
        $region117: #{tpu_custom_call.1} parent=109 // pred_region
          %s867 = sand.u32 %s31, 1
          %s868 = scalar_lea.sflag [#allocation7], %s867
          %s869 = sand.u32 %s215, 1
          %s870 = smul.addr %s869, 8
          %s871 = scalar_lea.vmem [#allocation6], %s870
          %872 = dma.done %s868, 128
        $region118: #{tpu_custom_call.1} parent=109 // pred_fallthru
          _
        // Predicated region
        $region119: #{tpu_custom_call.1} parent=109 // pred_check
          %p873 = pneg %p256
        $region120: #{tpu_custom_call.1} parent=109 // pred_check_branch
          %875 = sbr.rel (%p873) target = $region122
        $region121: #{tpu_custom_call.1} parent=109 // pred_region
          %s876 = sand.u32 %s31, 1
          %s877 = scalar_lea.sflag [#allocation7], %s876
          %s878 = sand.u32 %s241, 1
          %s879 = smul.addr %s878, 8
          %s880 = scalar_lea.vmem [#allocation8], %s879
          %881 = dma.done %s877, 128
        $region122: #{tpu_custom_call.1} parent=109 // pred_fallthru
          _
        // Predicated region
        $region123: #{tpu_custom_call.1} parent=109 // pred_check
          %p882 = pneg %p282
        $region124: #{tpu_custom_call.1} parent=109 // pred_check_branch
          %884 = sbr.rel (%p882) target = $region126
        $region125: #{tpu_custom_call.1} parent=109 // pred_region
          %s885 = sand.u32 %s267, 1
          %s886 = scalar_lea.sflag [#allocation10], %s885
          %s887 = sand.u32 %s267, 1
          %s888 = smul.addr %s887, 8
          %s889 = scalar_lea.vmem [#allocation9], %s888
          %890 = dma.done %s886, 128
        $region126: #{tpu_custom_call.1} parent=109 // pred_fallthru
          _
      $region110: #{tpu_custom_call.1} parent=5 // pred_fallthru
        _
    $region6: #{tpu_custom_call.1} parent=1 // loop_footer
      %s29 = sadd.s32 1, %s25
    $region7: #{tpu_custom_call.1} parent=1 // loop_footer_branch
      %24 = sbr.rel target = $region3
    $region8: #{tpu_custom_call.1} parent=1 // loop_exit
      _
    %891 = vsyncpa [#allocation5], 1
    %s892 = scalar_lea.sflag [#allocation5], 1
    %893 = vsyncpa %s892, 1
    %894 = vsyncpa [#allocation7], 1
    %s895 = scalar_lea.sflag [#allocation7], 1
    %896 = vsyncpa %s895, 1
    %897 = vsyncpa [#allocation10], 1
    %s898 = scalar_lea.sflag [#allocation10], 1
    %899 = vsyncpa %s898, 1

</llo_original>
